<compile_context>
chip_gen: v5e
topology: v5e:2x2
jax: 0.10.0
libtpu: 0.0.40
codegen_flags: <defaults>
</compile_context>

<pallas_src>
import jax
import jax.numpy as jnp
from jax.experimental import pallas as pl
from jax.experimental.pallas import tpu as pltpu


def _round_up(n, m):
    return ((n + m - 1) // m) * m


# ---------------------------------------------------------------------------
# Kernel
# ---------------------------------------------------------------------------
def dqn_kernel(x_ref, w1_ref, s1_ref, b1_ref, w2_ref, s2_ref, b2_ref,
               w3_ref, s3_ref, b3_ref, o_ref):
    # x tile arrives already in bf16 (cast fused into the wrapper's pad).
    x = x_ref[...]                                                  # bf16 (TB, OBS_P)

    # Layer 1: int8 weights -> bf16 (exact for |q|<=127), MXU dot, post-scale.
    w1 = w1_ref[...].astype(jnp.float32).astype(jnp.bfloat16)      # (OBS_P, H)
    h1 = jnp.dot(x, w1, preferred_element_type=jnp.float32)
    h1 = jnp.maximum(h1 * s1_ref[...] + b1_ref[...], 0.0)          # f32 (TB, H)

    # Layer 2.
    w2 = w2_ref[...].astype(jnp.float32).astype(jnp.bfloat16)      # (H, H)
    h2 = jnp.dot(h1.astype(jnp.bfloat16), w2,
                 preferred_element_type=jnp.float32)
    h2 = jnp.maximum(h2 * s2_ref[...] + b2_ref[...], 0.0)          # f32 (TB, H)

    # Layer 3 (no activation); padded action lanes stay exactly 0.
    w3 = w3_ref[...].astype(jnp.float32).astype(jnp.bfloat16)      # (H, ACT_P)
    out = jnp.dot(h2.astype(jnp.bfloat16), w3,
                  preferred_element_type=jnp.float32)
    o_ref[...] = out * s3_ref[...] + b3_ref[...]                   # f32 (TB, ACT_P)


# ---------------------------------------------------------------------------
# Parameter construction / packing
# ---------------------------------------------------------------------------
def init_params(key, n_observations, n_actions, hidden=512):
    """Deterministic PyTorch-style (uniform +/- 1/sqrt(fan_in)) init, f32."""
    def linear(k, fan_in, fan_out):
        kw, kb = jax.random.split(k)
        bound = 1.0 / (fan_in ** 0.5)
        w = jax.random.uniform(kw, (fan_in, fan_out), jnp.float32, -bound, bound)
        b = jax.random.uniform(kb, (1, fan_out), jnp.float32, -bound, bound)
        return w, b

    k1, k2, k3 = jax.random.split(key, 3)
    w1, b1 = linear(k1, n_observations, hidden)
    w2, b2 = linear(k2, hidden, hidden)
    w3, b3 = linear(k3, hidden, n_actions)
    return {"w1": w1, "b1": b1, "w2": w2, "b2": b2, "w3": w3, "b3": b3}


def _quantize_per_channel(w):
    """int8 symmetric quantization with one f32 scale per output channel."""
    amax = jnp.max(jnp.abs(w), axis=0, keepdims=True)               # (1, fan_out)
    scale = jnp.maximum(amax, 1e-8) / 127.0
    q = jnp.clip(jnp.round(w / scale), -127.0, 127.0).astype(jnp.int8)
    return q, scale.astype(jnp.float32)


def prepare_params(params):
    """Quantize weights to int8 (+ per-channel scales) and pad edge dims.

    * w1 rows padded to a multiple of 32 (int8 sublane tile) with zeros.
    * w3 / s3 / b3 columns padded to 128 (lane-dense output); padded columns
      get q=0, scale=1, bias=0 so padded output lanes are exactly 0.
    """
    n_obs, H = params["w1"].shape
    n_act = params["w3"].shape[1]
    obs_p = _round_up(n_obs, 32)
    act_p = _round_up(n_act, 128)

    q1, s1 = _quantize_per_channel(params["w1"])
    q2, s2 = _quantize_per_channel(params["w2"])
    q3, s3 = _quantize_per_channel(params["w3"])

    w1_q = jnp.zeros((obs_p, H), jnp.int8).at[:n_obs, :].set(q1)
    w3_q = jnp.zeros((H, act_p), jnp.int8).at[:, :n_act].set(q3)
    s3_p = jnp.ones((1, act_p), jnp.float32).at[:, :n_act].set(s3)
    b3_p = jnp.zeros((1, act_p), jnp.float32).at[:, :n_act].set(
        params["b3"].astype(jnp.float32))

    return {
        "w1": w1_q, "s1": s1, "b1": params["b1"].astype(jnp.float32),
        "w2": q2,   "s2": s2, "b2": params["b2"].astype(jnp.float32),
        "w3": w3_q, "s3": s3_p, "b3": b3_p,
        "n_obs": n_obs,     # static python ints (not passed to pallas_call)
        "n_act": n_act,
    }


# ---------------------------------------------------------------------------
# Wrapper
# ---------------------------------------------------------------------------
def _pick_tiles(B, max_tile=512):
    """Batch tiling: multiple of 16 rows, tiles <= ~max_tile, minimal padding."""
    bp0 = _round_up(max(B, 1), 16)
    n_tiles = -(-bp0 // max_tile)               # ceil-div
    tb = _round_up(-(-bp0 // n_tiles), 16)      # per-tile rows, sublane aligned
    bp = tb * n_tiles
    return bp, tb, n_tiles


def dqn_forward(x, pp):
    """x: (B, n_observations) float; pp: output of prepare_params."""
    B, n_obs = x.shape
    obs_p, H = pp["w1"].shape
    act_p = pp["w3"].shape[1]
    n_act = pp["n_act"]

    bp, tb, n_tiles = _pick_tiles(B)

    # Fused pad + bf16 cast of x in the wrapper (narrow 32-lane edge, not 128).
    x_p = jnp.zeros((bp, obs_p), jnp.bfloat16).at[:B, :n_obs].set(
        x.astype(jnp.bfloat16))

    const = lambda i: (0, 0)   # weights / scales / biases: resident across tiles

    weight_bytes = obs_p * H + H * H + H * act_p            # int8
    cost = pl.CostEstimate(
        flops=2 * bp * (obs_p * H + H * H + H * act_p),
        transcendentals=0,
        bytes_accessed=(bp * obs_p * 2                      # x (bf16)
                        + weight_bytes                      # int8 weights
                        + (2 * H + act_p) * 2 * 4           # scales + biases
                        + bp * act_p * 4),                  # out (f32)
    )

    # Single TensorCore ("arbitrary") for small tile counts: megacore would
    # duplicate the resident weight DMA into both cores' VMEM for no benefit.
    semantics = ("arbitrary",) if n_tiles < 8 else ("parallel",)

    out = pl.pallas_call(
        dqn_kernel,
        out_shape=jax.ShapeDtypeStruct((bp, act_p), jnp.float32),
        grid=(n_tiles,),
        in_specs=[
            pl.BlockSpec((tb, obs_p), lambda i: (i, 0)),   # x: tiled over batch
            pl.BlockSpec((obs_p, H), const),               # w1 (int8, resident)
            pl.BlockSpec((1, H), const),                   # s1
            pl.BlockSpec((1, H), const),                   # b1
            pl.BlockSpec((H, H), const),                   # w2 (int8, resident)
            pl.BlockSpec((1, H), const),                   # s2
            pl.BlockSpec((1, H), const),                   # b2
            pl.BlockSpec((H, act_p), const),               # w3 (int8, resident)
            pl.BlockSpec((1, act_p), const),               # s3
            pl.BlockSpec((1, act_p), const),               # b3
        ],
        out_specs=pl.BlockSpec((tb, act_p), lambda i: (i, 0)),
        compiler_params=pltpu.CompilerParams(dimension_semantics=semantics),
        cost_estimate=cost,
    )(x_p, pp["w1"], pp["s1"], pp["b1"], pp["w2"], pp["s2"], pp["b2"],
      pp["w3"], pp["s3"], pp["b3"])

    return out[:B, :n_act]


# ---------------------------------------------------------------------------
# References
# ---------------------------------------------------------------------------
def dqn_reference(x, pp):
    """Pure-JAX reference following the same int8-weight / bf16-activation path."""
    n_act = pp["n_act"]
    w1 = pp["w1"].astype(jnp.float32) * pp["s1"]        # padded rows are zero
    w2 = pp["w2"].astype(jnp.float32) * pp["s2"]
    w3 = pp["w3"].astype(jnp.float32) * pp["s3"]        # padded cols are zero
    obs_p = w1.shape[0]
    B, n_obs = x.shape
    xb = jnp.zeros((B, obs_p), jnp.float32).at[:, :n_obs].set(
        x.astype(jnp.bfloat16).astype(jnp.float32))
    h1 = jnp.maximum(xb @ w1 + pp["b1"], 0.0)
    h1 = h1.astype(jnp.bfloat16).astype(jnp.float32)
    h2 = jnp.maximum(h1 @ w2 + pp["b2"], 0.0)
    h2 = h2.astype(jnp.bfloat16).astype(jnp.float32)
    return (h2 @ w3 + pp["b3"])[:, :n_act]


def dqn_reference_f32(x, params):
    """True full-f32 reference of the PyTorch module (no quantization)."""
    h1 = jnp.maximum(x @ params["w1"] + params["b1"], 0.0)
    h2 = jnp.maximum(h1 @ params["w2"] + params["b2"], 0.0)
    return h2 @ params["w3"] + params["b3"]


if __name__ == "__main__":
    # Small shapes consistent with a gym_brt env: 6 observations, 3 actions.
    batch = 2
    n_observations = 6
    n_actions = 3

    key = jax.random.PRNGKey(0)
    k_params, k_x = jax.random.split(key)
    params = init_params(k_params, n_observations, n_actions)
    pp = prepare_params(params)
    x = jax.random.normal(k_x, (batch, n_observations), jnp.float32)

    out = jax.block_until_ready(dqn_forward(x, pp))
    ref = dqn_reference(x, pp)
    ref_f32 = dqn_reference_f32(x, params)

    assert out.shape == (batch, n_actions), out.shape
    # Matched-path check (same int8/bf16 rounding as the kernel): tight.
    assert jnp.allclose(out, ref, atol=2e-2, rtol=2e-2), (
        float(jnp.max(jnp.abs(out - ref))))
    # Sanity check against the true f32 PyTorch-equivalent module: loose bound
    # covering the intentional int8-weight / bf16-activation approximation.
    assert float(jnp.max(jnp.abs(out - ref_f32))) < 1e-1, (
        float(jnp.max(jnp.abs(out - ref_f32))))
    print("KERNEL_OK")
</pallas_src>

<mosaic_0001>
module attributes {stable_mosaic.version = 11 : i64} {
  func.func @dqn_kernel(%arg0: i32, %arg1: memref<16x32xbf16, #tpu.memory_space<vmem>>, %arg2: memref<32x512xi8, #tpu.memory_space<vmem>>, %arg3: memref<1x512xf32, #tpu.memory_space<vmem>>, %arg4: memref<1x512xf32, #tpu.memory_space<vmem>>, %arg5: memref<512x512xi8, #tpu.memory_space<vmem>>, %arg6: memref<1x512xf32, #tpu.memory_space<vmem>>, %arg7: memref<1x512xf32, #tpu.memory_space<vmem>>, %arg8: memref<512x128xi8, #tpu.memory_space<vmem>>, %arg9: memref<1x128xf32, #tpu.memory_space<vmem>>, %arg10: memref<1x128xf32, #tpu.memory_space<vmem>>, %arg11: memref<16x128xf32, #tpu.memory_space<vmem>>) attributes {dimension_semantics = [#tpu.dimension_semantics<arbitrary>], iteration_bounds = array<i64: 1>, scalar_prefetch = 0 : i64, scratch_operands = 0 : i64, tpu.core_type = #tpu.core_type<tc>, window_params = [{transform_indices = @transform_0, window_bounds = array<i64: 16, 32>}, {pipeline_mode = #tpu.pipeline_mode<synchronous>, transform_indices = @transform_1, window_bounds = array<i64: 32, 512>}, {pipeline_mode = #tpu.pipeline_mode<synchronous>, transform_indices = @transform_2, window_bounds = array<i64: 1, 512>}, {pipeline_mode = #tpu.pipeline_mode<synchronous>, transform_indices = @transform_3, window_bounds = array<i64: 1, 512>}, {pipeline_mode = #tpu.pipeline_mode<synchronous>, transform_indices = @transform_4, window_bounds = array<i64: 512, 512>}, {pipeline_mode = #tpu.pipeline_mode<synchronous>, transform_indices = @transform_5, window_bounds = array<i64: 1, 512>}, {pipeline_mode = #tpu.pipeline_mode<synchronous>, transform_indices = @transform_6, window_bounds = array<i64: 1, 512>}, {pipeline_mode = #tpu.pipeline_mode<synchronous>, transform_indices = @transform_7, window_bounds = array<i64: 512, 128>}, {pipeline_mode = #tpu.pipeline_mode<synchronous>, transform_indices = @transform_8, window_bounds = array<i64: 1, 128>}, {pipeline_mode = #tpu.pipeline_mode<synchronous>, transform_indices = @transform_9, window_bounds = array<i64: 1, 128>}, {transform_indices = @transform_10, window_bounds = array<i64: 16, 128>}]} {
    %c0 = arith.constant 0 : index
    %c0_0 = arith.constant 0 : index
    %0 = vector.load %arg1[%c0, %c0_0] : memref<16x32xbf16, #tpu.memory_space<vmem>>, vector<16x32xbf16>
    %c0_1 = arith.constant 0 : index
    %c0_2 = arith.constant 0 : index
    %1 = vector.load %arg2[%c0_1, %c0_2] : memref<32x512xi8, #tpu.memory_space<vmem>>, vector<32x512xi8>
    %2 = arith.sitofp %1 : vector<32x512xi8> to vector<32x512xf32>
    %3 = arith.truncf %2 : vector<32x512xf32> to vector<32x512xbf16>
    %cst = arith.constant dense<0.000000e+00> : vector<16x512xf32>
    %4 = tpu.matmul %0, %3, %cst {dimension_numbers = #tpu.dot_dimension_numbers<[1], [0], [0], [1], [0, 0, 1, 1], [], []>} : vector<16x32xbf16>, vector<32x512xbf16>, vector<16x512xf32> -> vector<16x512xf32>
    %c0_3 = arith.constant 0 : index
    %c0_4 = arith.constant 0 : index
    %5 = vector.load %arg3[%c0_3, %c0_4] : memref<1x512xf32, #tpu.memory_space<vmem>>, vector<1x512xf32>
    %6 = vector.broadcast %5 : vector<1x512xf32> to vector<16x512xf32>
    %7 = arith.mulf %4, %6 : vector<16x512xf32>
    %c0_5 = arith.constant 0 : index
    %c0_6 = arith.constant 0 : index
    %8 = vector.load %arg4[%c0_5, %c0_6] : memref<1x512xf32, #tpu.memory_space<vmem>>, vector<1x512xf32>
    %9 = vector.broadcast %8 : vector<1x512xf32> to vector<16x512xf32>
    %10 = arith.addf %7, %9 : vector<16x512xf32>
    %cst_7 = arith.constant 0.000000e+00 : f32
    %11 = vector.broadcast %cst_7 : f32 to vector<16x512xf32>
    %12 = arith.maximumf %10, %11 : vector<16x512xf32>
    %c0_8 = arith.constant 0 : index
    %c0_9 = arith.constant 0 : index
    %13 = vector.load %arg5[%c0_8, %c0_9] : memref<512x512xi8, #tpu.memory_space<vmem>>, vector<512x512xi8>
    %14 = arith.sitofp %13 : vector<512x512xi8> to vector<512x512xf32>
    %15 = arith.truncf %14 : vector<512x512xf32> to vector<512x512xbf16>
    %16 = arith.truncf %12 : vector<16x512xf32> to vector<16x512xbf16>
    %cst_10 = arith.constant dense<0.000000e+00> : vector<16x512xf32>
    %17 = tpu.matmul %16, %15, %cst_10 {dimension_numbers = #tpu.dot_dimension_numbers<[1], [0], [0], [1], [0, 0, 1, 1], [], []>} : vector<16x512xbf16>, vector<512x512xbf16>, vector<16x512xf32> -> vector<16x512xf32>
    %c0_11 = arith.constant 0 : index
    %c0_12 = arith.constant 0 : index
    %18 = vector.load %arg6[%c0_11, %c0_12] : memref<1x512xf32, #tpu.memory_space<vmem>>, vector<1x512xf32>
    %19 = vector.broadcast %18 : vector<1x512xf32> to vector<16x512xf32>
    %20 = arith.mulf %17, %19 : vector<16x512xf32>
    %c0_13 = arith.constant 0 : index
    %c0_14 = arith.constant 0 : index
    %21 = vector.load %arg7[%c0_13, %c0_14] : memref<1x512xf32, #tpu.memory_space<vmem>>, vector<1x512xf32>
    %22 = vector.broadcast %21 : vector<1x512xf32> to vector<16x512xf32>
    %23 = arith.addf %20, %22 : vector<16x512xf32>
    %cst_15 = arith.constant 0.000000e+00 : f32
    %24 = vector.broadcast %cst_15 : f32 to vector<16x512xf32>
    %25 = arith.maximumf %23, %24 : vector<16x512xf32>
    %c0_16 = arith.constant 0 : index
    %c0_17 = arith.constant 0 : index
    %26 = vector.load %arg8[%c0_16, %c0_17] : memref<512x128xi8, #tpu.memory_space<vmem>>, vector<512x128xi8>
    %27 = arith.sitofp %26 : vector<512x128xi8> to vector<512x128xf32>
    %28 = arith.truncf %27 : vector<512x128xf32> to vector<512x128xbf16>
    %29 = arith.truncf %25 : vector<16x512xf32> to vector<16x512xbf16>
    %cst_18 = arith.constant dense<0.000000e+00> : vector<16x128xf32>
    %30 = tpu.matmul %29, %28, %cst_18 {dimension_numbers = #tpu.dot_dimension_numbers<[1], [0], [0], [1], [0, 0, 1, 1], [], []>} : vector<16x512xbf16>, vector<512x128xbf16>, vector<16x128xf32> -> vector<16x128xf32>
    %c0_19 = arith.constant 0 : index
    %c0_20 = arith.constant 0 : index
    %31 = vector.load %arg9[%c0_19, %c0_20] : memref<1x128xf32, #tpu.memory_space<vmem>>, vector<1x128xf32>
    %32 = vector.broadcast %31 : vector<1x128xf32> to vector<16x128xf32>
    %33 = arith.mulf %30, %32 : vector<16x128xf32>
    %c0_21 = arith.constant 0 : index
    %c0_22 = arith.constant 0 : index
    %34 = vector.load %arg10[%c0_21, %c0_22] : memref<1x128xf32, #tpu.memory_space<vmem>>, vector<1x128xf32>
    %35 = vector.broadcast %34 : vector<1x128xf32> to vector<16x128xf32>
    %36 = arith.addf %33, %35 : vector<16x128xf32>
    %c0_23 = arith.constant 0 : index
    %c0_24 = arith.constant 0 : index
    %37 = vector.load %arg11[%c0_23, %c0_24] : memref<16x128xf32, #tpu.memory_space<vmem>>, vector<16x128xf32>
    tpu.vector_store %arg11[%c0_23, %c0_24], %36 {strides = array<i32>} : memref<16x128xf32, #tpu.memory_space<vmem>>, vector<16x128xf32>,
    return
  }
  func.func @transform_0(%arg0: i32) -> (i32, i32) {
    %c0_i32 = arith.constant 0 : i32
    %c0_i32_0 = arith.constant 0 : i32
    return %arg0, %c0_i32 : i32, i32
  }
  func.func @transform_1(%arg0: i32) -> (i32, i32) {
    %c0_i32 = arith.constant 0 : i32
    %c0_i32_0 = arith.constant 0 : i32
    %c0_i32_1 = arith.constant 0 : i32
    return %c0_i32, %c0_i32_0 : i32, i32
  }
  func.func @transform_2(%arg0: i32) -> (i32, i32) {
    %c0_i32 = arith.constant 0 : i32
    %c0_i32_0 = arith.constant 0 : i32
    %c0_i32_1 = arith.constant 0 : i32
    return %c0_i32, %c0_i32_0 : i32, i32
  }
  func.func @transform_3(%arg0: i32) -> (i32, i32) {
    %c0_i32 = arith.constant 0 : i32
    %c0_i32_0 = arith.constant 0 : i32
    %c0_i32_1 = arith.constant 0 : i32
    return %c0_i32, %c0_i32_0 : i32, i32
  }
  func.func @transform_4(%arg0: i32) -> (i32, i32) {
    %c0_i32 = arith.constant 0 : i32
    %c0_i32_0 = arith.constant 0 : i32
    %c0_i32_1 = arith.constant 0 : i32
    return %c0_i32, %c0_i32_0 : i32, i32
  }
  func.func @transform_5(%arg0: i32) -> (i32, i32) {
    %c0_i32 = arith.constant 0 : i32
    %c0_i32_0 = arith.constant 0 : i32
    %c0_i32_1 = arith.constant 0 : i32
    return %c0_i32, %c0_i32_0 : i32, i32
  }
  func.func @transform_6(%arg0: i32) -> (i32, i32) {
    %c0_i32 = arith.constant 0 : i32
    %c0_i32_0 = arith.constant 0 : i32
    %c0_i32_1 = arith.constant 0 : i32
    return %c0_i32, %c0_i32_0 : i32, i32
  }
  func.func @transform_7(%arg0: i32) -> (i32, i32) {
    %c0_i32 = arith.constant 0 : i32
    %c0_i32_0 = arith.constant 0 : i32
    %c0_i32_1 = arith.constant 0 : i32
    return %c0_i32, %c0_i32_0 : i32, i32
  }
  func.func @transform_8(%arg0: i32) -> (i32, i32) {
    %c0_i32 = arith.constant 0 : i32
    %c0_i32_0 = arith.constant 0 : i32
    %c0_i32_1 = arith.constant 0 : i32
    return %c0_i32, %c0_i32_0 : i32, i32
  }
  func.func @transform_9(%arg0: i32) -> (i32, i32) {
    %c0_i32 = arith.constant 0 : i32
    %c0_i32_0 = arith.constant 0 : i32
    %c0_i32_1 = arith.constant 0 : i32
    return %c0_i32, %c0_i32_0 : i32, i32
  }
  func.func @transform_10(%arg0: i32) -> (i32, i32) {
    %c0_i32 = arith.constant 0 : i32
    %c0_i32_0 = arith.constant 0 : i32
    return %arg0, %c0_i32 : i32, i32
  }
}

</mosaic_0001>

<llo_original>
// kernel: tpu_custom_call.1
$region0: #{tpu_custom_call.1}
  #allocation0 [shape = 'u32[]', space=smem, size = 0x4, offset = 0x4, fixed_abs, tag = 'smem constant byte address 0x4 - core index']
  #allocation1 [shape = 'u32[72,128]{1,0:T(1,128)}', space=vmem, size = 0x9000, scoped, tag = 'internal scratch']
  %s0 = inlined_call_operand.hbm [shape: bf16[16,32], index: 0, kind: input, shape index: {}]
  %s1 = inlined_call_operand.hbm [shape: s8[32,512], index: 1, kind: input, shape index: {}]
  %s2 = inlined_call_operand.hbm [shape: f32[1,512], index: 2, kind: input, shape index: {}]
  %s3 = inlined_call_operand.hbm [shape: f32[1,512], index: 3, kind: input, shape index: {}]
  %s4 = inlined_call_operand.hbm [shape: s8[512,512], index: 4, kind: input, shape index: {}]
  %s5 = inlined_call_operand.vmem [shape: f32[1,512], index: 5, kind: input, shape index: {}]
  %s6 = inlined_call_operand.hbm [shape: f32[1,512], index: 6, kind: input, shape index: {}]
  %s7 = inlined_call_operand.hbm [shape: s8[512,128], index: 7, kind: input, shape index: {}]
  %s8 = inlined_call_operand.vmem [shape: f32[1,128], index: 8, kind: input, shape index: {}]
  %s9 = inlined_call_operand.vmem [shape: f32[1,128], index: 9, kind: input, shape index: {}]
  %s10 = inlined_call_operand.hbm [shape: f32[16,128], index: 10, kind: output, shape index: {}]
  %s11 = sld [smem:[#allocation0]]
  $region78: #{tpu_custom_call.1} parent=0
    _
  %s13 = ssub.s32 1, %s11
  %s14 = scalar_select 0, %s13, %s11
  $region1: #{tpu_custom_call.1} parent=0
    #allocation2 [shape = 'u8[4096]{0}', space=vmem, size = 0x1000, scoped, tag = 'input window, operand 0, single buffered']
    #allocation3 [shape = 's32[1]{0}', space=sflag, size = 0x4, scoped, tag = 'scoped memory for tpu_custom_call.1']
    #allocation4 [shape = 's32[1]{0}', space=sflag, size = 0x4, scoped, tag = 'scoped memory for tpu_custom_call.1']
    #allocation5 [shape = 'u8[16384]{0}', space=vmem, size = 0x4000, scoped, tag = 'input window, operand 1, single buffered']
    #allocation6 [shape = 's32[1]{0}', space=sflag, size = 0x4, scoped, tag = 'scoped memory for tpu_custom_call.1']
    #allocation7 [shape = 'u8[2048]{0}', space=vmem, size = 0x800, scoped, tag = 'input window, operand 2, single buffered']
    #allocation8 [shape = 'u8[2048]{0}', space=vmem, size = 0x800, scoped, tag = 'input window, operand 3, single buffered']
    #allocation9 [shape = 's32[1]{0}', space=sflag, size = 0x4, scoped, tag = 'scoped memory for tpu_custom_call.1']
    #allocation10 [shape = 'u8[262144]{0}', space=vmem, size = 0x40000, scoped, tag = 'input window, operand 4, single buffered']
    #allocation11 [shape = 'u8[2048]{0}', space=vmem, size = 0x800, scoped, tag = 'input window, operand 6, single buffered']
    #allocation12 [shape = 's32[1]{0}', space=sflag, size = 0x4, scoped, tag = 'scoped memory for tpu_custom_call.1']
    #allocation13 [shape = 'u8[65536]{0}', space=vmem, size = 0x10000, scoped, tag = 'input window, operand 7, single buffered']
    #allocation14 [shape = 'u8[8192]{0}', space=vmem, size = 0x2000, scoped, tag = 'output window, operand 0, single buffered']
    %15 = vsyncpa [#allocation3], 0
    %16 = vsyncpa [#allocation6], 0
    %17 = vsyncpa [#allocation9], 0
    %18 = vsyncpa [#allocation12], 0
    %19 = vsyncpa [#allocation4], 0
    // Predicated region
    $region2: #{tpu_custom_call.1} parent=1 // pred_check
      _
    $region3: #{tpu_custom_call.1} parent=1 // pred_check_branch
      %21 = sbr.rel (0) target = $region5
    $region4: #{tpu_custom_call.1} parent=1 // pred_region
      %23 = vsyncadd [#allocation3], 0
      %s24 = sshll.u32 %s0, 4
      %s25 = int_to_ptr.hbm [resolvable:$true] %s24
      %s26 = sshll.u32 [#allocation2], 4
      %s27 = int_to_ptr.vmem [resolvable:$true] %s26
      %32 = dma.hbm_to_vmem [thread:$0]  %s25, 128, %s27, [#allocation3], 64, 64, 4
    $region5: #{tpu_custom_call.1} parent=1 // pred_fallthru
      _
    // Predicated region
    $region6: #{tpu_custom_call.1} parent=1 // pred_check
      _
    $region7: #{tpu_custom_call.1} parent=1 // pred_check_branch
      %34 = sbr.rel (0) target = $region9
    $region8: #{tpu_custom_call.1} parent=1 // pred_region
      %36 = vsyncadd [#allocation6], 0
      %s38 = sshll.u32 %s1, 4
      %s39 = int_to_ptr.hbm [resolvable:$true] %s38
      %s40 = sshll.u32 [#allocation5], 4
      %s41 = int_to_ptr.vmem [resolvable:$true] %s40
      %43 = dma.hbm_to_vmem [thread:$0]  %s39, 512, %s41, [#allocation6]
    $region9: #{tpu_custom_call.1} parent=1 // pred_fallthru
      _
    // Predicated region
    $region10: #{tpu_custom_call.1} parent=1 // pred_check
      _
    $region11: #{tpu_custom_call.1} parent=1 // pred_check_branch
      %45 = sbr.rel (0) target = $region13
    $region12: #{tpu_custom_call.1} parent=1 // pred_region
      %47 = vsyncadd [#allocation6], 0
      %s49 = sshll.u32 %s2, 4
      %s50 = int_to_ptr.hbm [resolvable:$true] %s49
      %s51 = sshll.u32 [#allocation7], 4
      %s52 = int_to_ptr.vmem [resolvable:$true] %s51
      %54 = dma.hbm_to_vmem [thread:$0]  %s50, 64, %s52, [#allocation6]
    $region13: #{tpu_custom_call.1} parent=1 // pred_fallthru
      _
    // Predicated region
    $region14: #{tpu_custom_call.1} parent=1 // pred_check
      _
    $region15: #{tpu_custom_call.1} parent=1 // pred_check_branch
      %56 = sbr.rel (0) target = $region17
    $region16: #{tpu_custom_call.1} parent=1 // pred_region
      %58 = vsyncadd [#allocation9], 0
      %s60 = sshll.u32 %s3, 4
      %s61 = int_to_ptr.hbm [resolvable:$true] %s60
      %s62 = sshll.u32 [#allocation8], 4
      %s63 = int_to_ptr.vmem [resolvable:$true] %s62
      %65 = dma.hbm_to_vmem [thread:$0]  %s61, 64, %s63, [#allocation9]
    $region17: #{tpu_custom_call.1} parent=1 // pred_fallthru
      _
    // Predicated region
    $region18: #{tpu_custom_call.1} parent=1 // pred_check
      _
    $region19: #{tpu_custom_call.1} parent=1 // pred_check_branch
      %67 = sbr.rel (0) target = $region21
    $region20: #{tpu_custom_call.1} parent=1 // pred_region
      %69 = vsyncadd [#allocation9], 0
      %s70 = sshll.u32 %s4, 4
      %s71 = int_to_ptr.hbm [resolvable:$true] %s70
      %s72 = sshll.u32 [#allocation10], 4
      %s73 = int_to_ptr.vmem [resolvable:$true] %s72
      %78 = dma.hbm_to_vmem [thread:$0]  %s71, 8192, %s73, [#allocation9], 512, 512, 32
    $region21: #{tpu_custom_call.1} parent=1 // pred_fallthru
      _
    // Predicated region
    $region22: #{tpu_custom_call.1} parent=1 // pred_check
      _
    $region23: #{tpu_custom_call.1} parent=1 // pred_check_branch
      %80 = sbr.rel (0) target = $region25
    $region24: #{tpu_custom_call.1} parent=1 // pred_region
      _
    $region25: #{tpu_custom_call.1} parent=1 // pred_fallthru
      _
    // Predicated region
    $region26: #{tpu_custom_call.1} parent=1 // pred_check
      _
    $region27: #{tpu_custom_call.1} parent=1 // pred_check_branch
      %82 = sbr.rel (0) target = $region29
    $region28: #{tpu_custom_call.1} parent=1 // pred_region
      %84 = vsyncadd [#allocation12], 0
      %s86 = sshll.u32 %s6, 4
      %s87 = int_to_ptr.hbm [resolvable:$true] %s86
      %s88 = sshll.u32 [#allocation11], 4
      %s89 = int_to_ptr.vmem [resolvable:$true] %s88
      %91 = dma.hbm_to_vmem [thread:$0]  %s87, 64, %s89, [#allocation12]
    $region29: #{tpu_custom_call.1} parent=1 // pred_fallthru
      _
    // Predicated region
    $region30: #{tpu_custom_call.1} parent=1 // pred_check
      _
    $region31: #{tpu_custom_call.1} parent=1 // pred_check_branch
      %93 = sbr.rel (0) target = $region33
    $region32: #{tpu_custom_call.1} parent=1 // pred_region
      %95 = vsyncadd [#allocation12], 0
      %s96 = sshll.u32 %s7, 4
      %s97 = int_to_ptr.hbm [resolvable:$true] %s96
      %s98 = sshll.u32 [#allocation13], 4
      %s99 = int_to_ptr.vmem [resolvable:$true] %s98
      %104 = dma.hbm_to_vmem [thread:$0]  %s97, 2048, %s99, [#allocation12], 128, 128, 8
    $region33: #{tpu_custom_call.1} parent=1 // pred_fallthru
      _
    // Predicated region
    $region34: #{tpu_custom_call.1} parent=1 // pred_check
      _
    $region35: #{tpu_custom_call.1} parent=1 // pred_check_branch
      %106 = sbr.rel (0) target = $region37
    $region36: #{tpu_custom_call.1} parent=1 // pred_region
      _
    $region37: #{tpu_custom_call.1} parent=1 // pred_fallthru
      _
    // Predicated region
    $region38: #{tpu_custom_call.1} parent=1 // pred_check
      _
    $region39: #{tpu_custom_call.1} parent=1 // pred_check_branch
      %108 = sbr.rel (0) target = $region41
    $region40: #{tpu_custom_call.1} parent=1 // pred_region
      _
    $region41: #{tpu_custom_call.1} parent=1 // pred_fallthru
      _
    // Predicated region
    $region42: #{tpu_custom_call.1} parent=1 // pred_check
      _
    $region43: #{tpu_custom_call.1} parent=1 // pred_check_branch
      %110 = sbr.rel (0) target = $region45
    $region44: #{tpu_custom_call.1} parent=1 // pred_region
      %112 = dma.done [#allocation3], 128
    $region45: #{tpu_custom_call.1} parent=1 // pred_fallthru
      _
    // Predicated region
    $region46: #{tpu_custom_call.1} parent=1 // pred_check
      _
    $region47: #{tpu_custom_call.1} parent=1 // pred_check_branch
      %114 = sbr.rel (0) target = $region49
    $region48: #{tpu_custom_call.1} parent=1 // pred_region
      %116 = dma.done [#allocation6], 512
    $region49: #{tpu_custom_call.1} parent=1 // pred_fallthru
      _
    // Predicated region
    $region50: #{tpu_custom_call.1} parent=1 // pred_check
      _
    $region51: #{tpu_custom_call.1} parent=1 // pred_check_branch
      %118 = sbr.rel (0) target = $region53
    $region52: #{tpu_custom_call.1} parent=1 // pred_region
      %120 = dma.done [#allocation6], 64
    $region53: #{tpu_custom_call.1} parent=1 // pred_fallthru
      _
    // Predicated region
    $region54: #{tpu_custom_call.1} parent=1 // pred_check
      _
    $region55: #{tpu_custom_call.1} parent=1 // pred_check_branch
      %122 = sbr.rel (0) target = $region57
    $region56: #{tpu_custom_call.1} parent=1 // pred_region
      %124 = dma.done [#allocation9], 64
    $region57: #{tpu_custom_call.1} parent=1 // pred_fallthru
      _
    // Predicated region
    $region58: #{tpu_custom_call.1} parent=1 // pred_check
      _
    $region59: #{tpu_custom_call.1} parent=1 // pred_check_branch
      %126 = sbr.rel (0) target = $region61
    $region60: #{tpu_custom_call.1} parent=1 // pred_region
      %128 = dma.done [#allocation9], 8192
    $region61: #{tpu_custom_call.1} parent=1 // pred_fallthru
      _
    // Predicated region
    $region62: #{tpu_custom_call.1} parent=1 // pred_check
      _
    $region63: #{tpu_custom_call.1} parent=1 // pred_check_branch
      %130 = sbr.rel (0) target = $region65
    $region64: #{tpu_custom_call.1} parent=1 // pred_region
      %132 = dma.done [#allocation12], 64
    $region65: #{tpu_custom_call.1} parent=1 // pred_fallthru
      _
    // Predicated region
    $region66: #{tpu_custom_call.1} parent=1 // pred_check
      _
    $region67: #{tpu_custom_call.1} parent=1 // pred_check_branch
      %134 = sbr.rel (0) target = $region69
    $region68: #{tpu_custom_call.1} parent=1 // pred_region
      %136 = dma.done [#allocation12], 2048
    $region69: #{tpu_custom_call.1} parent=1 // pred_fallthru
      _
    %v138 = vld [vmem:[#allocation2] sm:$0xf]
    %v139 = vld [vmem:[#allocation2 + $0x4] sm:$0xf]
    %v140 = vld [vmem:[#allocation5] sm:$0xff]
    %v141 = vld [vmem:[#allocation5 + $0x8] sm:$0xff]
    %v142 = vld [vmem:[#allocation5 + $0x10] sm:$0xff]
    %v143 = vld [vmem:[#allocation5 + $0x18] sm:$0xff]
    %v144 = vunpack.c.0.s8 %v140
    %v145 = vunpack.c.0.s8 %v141
    %v146 = vunpack.c.0.s8 %v142
    %v147 = vunpack.c.0.s8 %v143
    %v148 = vunpack.c.1.s8 %v140
    %v149 = vunpack.c.1.s8 %v141
    %v150 = vunpack.c.1.s8 %v142
    %v151 = vunpack.c.1.s8 %v143
    %v152 = vunpack.c.2.s8 %v140
    %v153 = vunpack.c.2.s8 %v141
    %v154 = vunpack.c.2.s8 %v142
    %v155 = vunpack.c.2.s8 %v143
    %v156 = vunpack.c.3.s8 %v140
    %v157 = vunpack.c.3.s8 %v141
    %v158 = vunpack.c.3.s8 %v142
    %v159 = vunpack.c.3.s8 %v143
    %v160 = vcvt.s32.f32 %v144
    %v161 = vcvt.s32.f32 %v145
    %v162 = vcvt.s32.f32 %v146
    %v163 = vcvt.s32.f32 %v147
    %v164 = vcvt.s32.f32 %v148
    %v165 = vcvt.s32.f32 %v149
    %v166 = vcvt.s32.f32 %v150
    %v167 = vcvt.s32.f32 %v151
    %v168 = vcvt.s32.f32 %v152
    %v169 = vcvt.s32.f32 %v153
    %v170 = vcvt.s32.f32 %v154
    %v171 = vcvt.s32.f32 %v155
    %v172 = vcvt.s32.f32 %v156
    %v173 = vcvt.s32.f32 %v157
    %v174 = vcvt.s32.f32 %v158
    %v175 = vcvt.s32.f32 %v159
    %v176 = vpack.c.bf16 %v164, %v160
    %v177 = vpack.c.bf16 %v165, %v161
    %v178 = vpack.c.bf16 %v166, %v162
    %v179 = vpack.c.bf16 %v167, %v163
    %v180 = vpack.c.bf16 %v172, %v168
    %v181 = vpack.c.bf16 %v173, %v169
    %v182 = vpack.c.bf16 %v174, %v170
    %v183 = vpack.c.bf16 %v175, %v171
    %v186 = vunpack.c.l.b16 %v138
    %v187 = vunpack.c.l.b16 %v139
    %v188 = vpack.c.b16 %v187, %v186
    %vm189 = vcmask 261120
    %v191 = vsel %vm189, %v188, 0
    %193 = vmatpush.bf16.msra.mxu0 0
    %194 = vmatpush.bf16.msra.mxu0 0
    %195 = vmatpush.bf16.msra.mxu0 0
    %196 = vmatpush.bf16.msra.mxu0 0
    %197 = vmatpush.bf16.msra.mxu0 0
    %198 = vmatpush.bf16.msra.mxu0 0
    %199 = vmatpush.bf16.msra.mxu0 %v180
    %200 = vmatpush.bf16.msra.mxu0 %v176
    %201 = vmatmul.bf16.gmra.mxu0 %v191
    %v202 = vpop.f32.mrf.mxu0
    %v203 = vadd.f32 0.0, %v202
    %v204 = vpop.f32.mrf.mxu0
    %v205 = vadd.f32 0.0, %v204
    %206 = vdwg.mxu0
    %207 = vmatpush.bf16.msra.mxu0 0
    %208 = vmatpush.bf16.msra.mxu0 0
    %209 = vmatpush.bf16.msra.mxu0 0
    %210 = vmatpush.bf16.msra.mxu0 0
    %211 = vmatpush.bf16.msra.mxu0 0
    %212 = vmatpush.bf16.msra.mxu0 0
    %213 = vmatpush.bf16.msra.mxu0 %v181
    %214 = vmatpush.bf16.msra.mxu0 %v177
    %215 = vmatmul.bf16.gmra.mxu0 %v191
    %v216 = vpop.f32.mrf.mxu0
    %v217 = vadd.f32 0.0, %v216
    %v218 = vpop.f32.mrf.mxu0
    %v219 = vadd.f32 0.0, %v218
    %220 = vdwg.mxu0
    %221 = vmatpush.bf16.msra.mxu0 0
    %222 = vmatpush.bf16.msra.mxu0 0
    %223 = vmatpush.bf16.msra.mxu0 0
    %224 = vmatpush.bf16.msra.mxu0 0
    %225 = vmatpush.bf16.msra.mxu0 0
    %226 = vmatpush.bf16.msra.mxu0 0
    %227 = vmatpush.bf16.msra.mxu0 %v182
    %228 = vmatpush.bf16.msra.mxu0 %v178
    %229 = vmatmul.bf16.gmra.mxu0 %v191
    %v230 = vpop.f32.mrf.mxu0
    %v231 = vadd.f32 0.0, %v230
    %v232 = vpop.f32.mrf.mxu0
    %v233 = vadd.f32 0.0, %v232
    %234 = vdwg.mxu0
    %235 = vmatpush.bf16.msra.mxu0 0
    %236 = vmatpush.bf16.msra.mxu0 0
    %237 = vmatpush.bf16.msra.mxu0 0
    %238 = vmatpush.bf16.msra.mxu0 0
    %239 = vmatpush.bf16.msra.mxu0 0
    %240 = vmatpush.bf16.msra.mxu0 0
    %241 = vmatpush.bf16.msra.mxu0 %v183
    %242 = vmatpush.bf16.msra.mxu0 %v179
    %243 = vmatmul.bf16.gmra.mxu0 %v191
    %v244 = vpop.f32.mrf.mxu0
    %v245 = vadd.f32 0.0, %v244
    %v246 = vpop.f32.mrf.mxu0
    %v247 = vadd.f32 0.0, %v246
    %248 = vdwg.mxu0
    %v249 = vld [vmem:[#allocation7] sm:$0xf]
    %v251 = vperm.slane %v249, 0
    %v252 = vperm.slane %v249, 1
    %v253 = vperm.slane %v249, 2
    %v254 = vperm.slane %v249, 3
    %v259 = vmul.f32 %v203, %v251
    %v260 = vmul.f32 %v217, %v252
    %v261 = vmul.f32 %v231, %v253
    %v262 = vmul.f32 %v245, %v254
    %v263 = vmul.f32 %v205, %v251
    %v264 = vmul.f32 %v219, %v252
    %v265 = vmul.f32 %v233, %v253
    %v266 = vmul.f32 %v247, %v254
    %v267 = vld [vmem:[#allocation8] sm:$0xf]
    %v269 = vperm.slane %v267, 0
    %v270 = vperm.slane %v267, 1
    %v271 = vperm.slane %v267, 2
    %v272 = vperm.slane %v267, 3
    %v277 = vadd.f32 %v259, %v269
    %v278 = vadd.f32 %v260, %v270
    %v279 = vadd.f32 %v261, %v271
    %v280 = vadd.f32 %v262, %v272
    %v281 = vadd.f32 %v263, %v269
    %v282 = vadd.f32 %v264, %v270
    %v283 = vadd.f32 %v265, %v271
    %v284 = vadd.f32 %v266, %v272
    %v285 = vmax.f32 %v277, 0.0
    %v286 = vmax.f32 %v278, 0.0
    %v287 = vmax.f32 %v279, 0.0
    %v288 = vmax.f32 %v280, 0.0
    %v289 = vmax.f32 %v281, 0.0
    %v290 = vmax.f32 %v282, 0.0
    %v291 = vmax.f32 %v283, 0.0
    %v292 = vmax.f32 %v284, 0.0
    %v293 = vld [vmem:[#allocation10] sm:$0xff]
    %v294 = vld [vmem:[#allocation10 + $0x8] sm:$0xff]
    %v295 = vld [vmem:[#allocation10 + $0x10] sm:$0xff]
    %v296 = vld [vmem:[#allocation10 + $0x18] sm:$0xff]
    %v297 = vld [vmem:[#allocation10 + $0x20] sm:$0xff]
    %v298 = vld [vmem:[#allocation10 + $0x28] sm:$0xff]
    %v299 = vld [vmem:[#allocation10 + $0x30] sm:$0xff]
    %v300 = vld [vmem:[#allocation10 + $0x38] sm:$0xff]
    %v301 = vld [vmem:[#allocation10 + $0x40] sm:$0xff]
    %v302 = vld [vmem:[#allocation10 + $0x48] sm:$0xff]
    %v303 = vld [vmem:[#allocation10 + $0x50] sm:$0xff]
    %v304 = vld [vmem:[#allocation10 + $0x58] sm:$0xff]
    %v305 = vld [vmem:[#allocation10 + $0x60] sm:$0xff]
    %v306 = vld [vmem:[#allocation10 + $0x68] sm:$0xff]
    %v307 = vld [vmem:[#allocation10 + $0x70] sm:$0xff]
    %v308 = vld [vmem:[#allocation10 + $0x78] sm:$0xff]
    %v309 = vld [vmem:[#allocation10 + $0x80] sm:$0xff]
    %v310 = vld [vmem:[#allocation10 + $0x88] sm:$0xff]
    %v311 = vld [vmem:[#allocation10 + $0x90] sm:$0xff]
    %v312 = vld [vmem:[#allocation10 + $0x98] sm:$0xff]
    %v313 = vld [vmem:[#allocation10 + $0xa0] sm:$0xff]
    %v314 = vld [vmem:[#allocation10 + $0xa8] sm:$0xff]
    %v315 = vld [vmem:[#allocation10 + $0xb0] sm:$0xff]
    %v316 = vld [vmem:[#allocation10 + $0xb8] sm:$0xff]
    %v317 = vld [vmem:[#allocation10 + $0xc0] sm:$0xff]
    %v318 = vld [vmem:[#allocation10 + $0xc8] sm:$0xff]
    %v319 = vld [vmem:[#allocation10 + $0xd0] sm:$0xff]
    %v320 = vld [vmem:[#allocation10 + $0xd8] sm:$0xff]
    %v321 = vld [vmem:[#allocation10 + $0xe0] sm:$0xff]
    %v322 = vld [vmem:[#allocation10 + $0xe8] sm:$0xff]
    %v323 = vld [vmem:[#allocation10 + $0xf0] sm:$0xff]
    %v324 = vld [vmem:[#allocation10 + $0xf8] sm:$0xff]
    %v325 = vld [vmem:[#allocation10 + $0x100] sm:$0xff]
    %v326 = vld [vmem:[#allocation10 + $0x108] sm:$0xff]
    %v327 = vld [vmem:[#allocation10 + $0x110] sm:$0xff]
    %v328 = vld [vmem:[#allocation10 + $0x118] sm:$0xff]
    %v329 = vld [vmem:[#allocation10 + $0x120] sm:$0xff]
    %v330 = vld [vmem:[#allocation10 + $0x128] sm:$0xff]
    %v331 = vld [vmem:[#allocation10 + $0x130] sm:$0xff]
    %v332 = vld [vmem:[#allocation10 + $0x138] sm:$0xff]
    %v333 = vld [vmem:[#allocation10 + $0x140] sm:$0xff]
    %v334 = vld [vmem:[#allocation10 + $0x148] sm:$0xff]
    %v335 = vld [vmem:[#allocation10 + $0x150] sm:$0xff]
    %v336 = vld [vmem:[#allocation10 + $0x158] sm:$0xff]
    %v337 = vld [vmem:[#allocation10 + $0x160] sm:$0xff]
    %v338 = vld [vmem:[#allocation10 + $0x168] sm:$0xff]
    %v339 = vld [vmem:[#allocation10 + $0x170] sm:$0xff]
    %v340 = vld [vmem:[#allocation10 + $0x178] sm:$0xff]
    %v341 = vld [vmem:[#allocation10 + $0x180] sm:$0xff]
    %v342 = vld [vmem:[#allocation10 + $0x188] sm:$0xff]
    %v343 = vld [vmem:[#allocation10 + $0x190] sm:$0xff]
    %v344 = vld [vmem:[#allocation10 + $0x198] sm:$0xff]
    %v345 = vld [vmem:[#allocation10 + $0x1a0] sm:$0xff]
    %v346 = vld [vmem:[#allocation10 + $0x1a8] sm:$0xff]
    %v347 = vld [vmem:[#allocation10 + $0x1b0] sm:$0xff]
    %v348 = vld [vmem:[#allocation10 + $0x1b8] sm:$0xff]
    %v349 = vld [vmem:[#allocation10 + $0x1c0] sm:$0xff]
    %v350 = vld [vmem:[#allocation10 + $0x1c8] sm:$0xff]
    %v351 = vld [vmem:[#allocation10 + $0x1d0] sm:$0xff]
    %v352 = vld [vmem:[#allocation10 + $0x1d8] sm:$0xff]
    %v353 = vld [vmem:[#allocation10 + $0x1e0] sm:$0xff]
    %v354 = vld [vmem:[#allocation10 + $0x1e8] sm:$0xff]
    %v355 = vld [vmem:[#allocation10 + $0x1f0] sm:$0xff]
    %v356 = vld [vmem:[#allocation10 + $0x1f8] sm:$0xff]
    %v357 = vunpack.c.0.s8 %v293
    %v358 = vunpack.c.0.s8 %v294
    %v359 = vunpack.c.0.s8 %v295
    %v360 = vunpack.c.0.s8 %v296
    %v361 = vunpack.c.1.s8 %v293
    %v362 = vunpack.c.1.s8 %v294
    %v363 = vunpack.c.1.s8 %v295
    %v364 = vunpack.c.1.s8 %v296
    %v365 = vunpack.c.2.s8 %v293
    %v366 = vunpack.c.2.s8 %v294
    %v367 = vunpack.c.2.s8 %v295
    %v368 = vunpack.c.2.s8 %v296
    %v369 = vunpack.c.3.s8 %v293
    %v370 = vunpack.c.3.s8 %v294
    %v371 = vunpack.c.3.s8 %v295
    %v372 = vunpack.c.3.s8 %v296
    %v373 = vunpack.c.0.s8 %v297
    %v374 = vunpack.c.0.s8 %v298
    %v375 = vunpack.c.0.s8 %v299
    %v376 = vunpack.c.0.s8 %v300
    %v377 = vunpack.c.1.s8 %v297
    %v378 = vunpack.c.1.s8 %v298
    %v379 = vunpack.c.1.s8 %v299
    %v380 = vunpack.c.1.s8 %v300
    %v381 = vunpack.c.2.s8 %v297
    %v382 = vunpack.c.2.s8 %v298
    %v383 = vunpack.c.2.s8 %v299
    %v384 = vunpack.c.2.s8 %v300
    %v385 = vunpack.c.3.s8 %v297
    %v386 = vunpack.c.3.s8 %v298
    %v387 = vunpack.c.3.s8 %v299
    %v388 = vunpack.c.3.s8 %v300
    %v389 = vunpack.c.0.s8 %v301
    %v390 = vunpack.c.0.s8 %v302
    %v391 = vunpack.c.0.s8 %v303
    %v392 = vunpack.c.0.s8 %v304
    %v393 = vunpack.c.1.s8 %v301
    %v394 = vunpack.c.1.s8 %v302
    %v395 = vunpack.c.1.s8 %v303
    %v396 = vunpack.c.1.s8 %v304
    %v397 = vunpack.c.2.s8 %v301
    %v398 = vunpack.c.2.s8 %v302
    %v399 = vunpack.c.2.s8 %v303
    %v400 = vunpack.c.2.s8 %v304
    %v401 = vunpack.c.3.s8 %v301
    %v402 = vunpack.c.3.s8 %v302
    %v403 = vunpack.c.3.s8 %v303
    %v404 = vunpack.c.3.s8 %v304
    %v405 = vunpack.c.0.s8 %v305
    %v406 = vunpack.c.0.s8 %v306
    %v407 = vunpack.c.0.s8 %v307
    %v408 = vunpack.c.0.s8 %v308
    %v409 = vunpack.c.1.s8 %v305
    %v410 = vunpack.c.1.s8 %v306
    %v411 = vunpack.c.1.s8 %v307
    %v412 = vunpack.c.1.s8 %v308
    %v413 = vunpack.c.2.s8 %v305
    %v414 = vunpack.c.2.s8 %v306
    %v415 = vunpack.c.2.s8 %v307
    %v416 = vunpack.c.2.s8 %v308
    %v417 = vunpack.c.3.s8 %v305
    %v418 = vunpack.c.3.s8 %v306
    %v419 = vunpack.c.3.s8 %v307
    %v420 = vunpack.c.3.s8 %v308
    %v421 = vunpack.c.0.s8 %v309
    %v422 = vunpack.c.0.s8 %v310
    %v423 = vunpack.c.0.s8 %v311
    %v424 = vunpack.c.0.s8 %v312
    %v425 = vunpack.c.1.s8 %v309
    %v426 = vunpack.c.1.s8 %v310
    %v427 = vunpack.c.1.s8 %v311
    %v428 = vunpack.c.1.s8 %v312
    %v429 = vunpack.c.2.s8 %v309
    %v430 = vunpack.c.2.s8 %v310
    %v431 = vunpack.c.2.s8 %v311
    %v432 = vunpack.c.2.s8 %v312
    %v433 = vunpack.c.3.s8 %v309
    %v434 = vunpack.c.3.s8 %v310
    %v435 = vunpack.c.3.s8 %v311
    %v436 = vunpack.c.3.s8 %v312
    %v437 = vunpack.c.0.s8 %v313
    %v438 = vunpack.c.0.s8 %v314
    %v439 = vunpack.c.0.s8 %v315
    %v440 = vunpack.c.0.s8 %v316
    %v441 = vunpack.c.1.s8 %v313
    %v442 = vunpack.c.1.s8 %v314
    %v443 = vunpack.c.1.s8 %v315
    %v444 = vunpack.c.1.s8 %v316
    %v445 = vunpack.c.2.s8 %v313
    %v446 = vunpack.c.2.s8 %v314
    %v447 = vunpack.c.2.s8 %v315
    %v448 = vunpack.c.2.s8 %v316
    %v449 = vunpack.c.3.s8 %v313
    %v450 = vunpack.c.3.s8 %v314
    %v451 = vunpack.c.3.s8 %v315
    %v452 = vunpack.c.3.s8 %v316
    %v453 = vunpack.c.0.s8 %v317
    %v454 = vunpack.c.0.s8 %v318
    %v455 = vunpack.c.0.s8 %v319
    %v456 = vunpack.c.0.s8 %v320
    %v457 = vunpack.c.1.s8 %v317
    %v458 = vunpack.c.1.s8 %v318
    %v459 = vunpack.c.1.s8 %v319
    %v460 = vunpack.c.1.s8 %v320
    %v461 = vunpack.c.2.s8 %v317
    %v462 = vunpack.c.2.s8 %v318
    %v463 = vunpack.c.2.s8 %v319
    %v464 = vunpack.c.2.s8 %v320
    %v465 = vunpack.c.3.s8 %v317
    %v466 = vunpack.c.3.s8 %v318
    %v467 = vunpack.c.3.s8 %v319
    %v468 = vunpack.c.3.s8 %v320
    %v469 = vunpack.c.0.s8 %v321
    %v470 = vunpack.c.0.s8 %v322
    %v471 = vunpack.c.0.s8 %v323
    %v472 = vunpack.c.0.s8 %v324
    %v473 = vunpack.c.1.s8 %v321
    %v474 = vunpack.c.1.s8 %v322
    %v475 = vunpack.c.1.s8 %v323
    %v476 = vunpack.c.1.s8 %v324
    %v477 = vunpack.c.2.s8 %v321
    %v478 = vunpack.c.2.s8 %v322
    %v479 = vunpack.c.2.s8 %v323
    %v480 = vunpack.c.2.s8 %v324
    %v481 = vunpack.c.3.s8 %v321
    %v482 = vunpack.c.3.s8 %v322
    %v483 = vunpack.c.3.s8 %v323
    %v484 = vunpack.c.3.s8 %v324
    %v485 = vunpack.c.0.s8 %v325
    %v486 = vunpack.c.0.s8 %v326
    %v487 = vunpack.c.0.s8 %v327
    %v488 = vunpack.c.0.s8 %v328
    %v489 = vunpack.c.1.s8 %v325
    %v490 = vunpack.c.1.s8 %v326
    %v491 = vunpack.c.1.s8 %v327
    %v492 = vunpack.c.1.s8 %v328
    %v493 = vunpack.c.2.s8 %v325
    %v494 = vunpack.c.2.s8 %v326
    %v495 = vunpack.c.2.s8 %v327
    %v496 = vunpack.c.2.s8 %v328
    %v497 = vunpack.c.3.s8 %v325
    %v498 = vunpack.c.3.s8 %v326
    %v499 = vunpack.c.3.s8 %v327
    %v500 = vunpack.c.3.s8 %v328
    %v501 = vunpack.c.0.s8 %v329
    %v502 = vunpack.c.0.s8 %v330
    %v503 = vunpack.c.0.s8 %v331
    %v504 = vunpack.c.0.s8 %v332
    %v505 = vunpack.c.1.s8 %v329
    %v506 = vunpack.c.1.s8 %v330
    %v507 = vunpack.c.1.s8 %v331
    %v508 = vunpack.c.1.s8 %v332
    %v509 = vunpack.c.2.s8 %v329
    %v510 = vunpack.c.2.s8 %v330
    %v511 = vunpack.c.2.s8 %v331
    %v512 = vunpack.c.2.s8 %v332
    %v513 = vunpack.c.3.s8 %v329
    %v514 = vunpack.c.3.s8 %v330
    %v515 = vunpack.c.3.s8 %v331
    %v516 = vunpack.c.3.s8 %v332
    %v517 = vunpack.c.0.s8 %v333
    %v518 = vunpack.c.0.s8 %v334
    %v519 = vunpack.c.0.s8 %v335
    %v520 = vunpack.c.0.s8 %v336
    %v521 = vunpack.c.1.s8 %v333
    %v522 = vunpack.c.1.s8 %v334
    %v523 = vunpack.c.1.s8 %v335
    %v524 = vunpack.c.1.s8 %v336
    %v525 = vunpack.c.2.s8 %v333
    %v526 = vunpack.c.2.s8 %v334
    %v527 = vunpack.c.2.s8 %v335
    %v528 = vunpack.c.2.s8 %v336
    %v529 = vunpack.c.3.s8 %v333
    %v530 = vunpack.c.3.s8 %v334
    %v531 = vunpack.c.3.s8 %v335
    %v532 = vunpack.c.3.s8 %v336
    %v533 = vunpack.c.0.s8 %v337
    %v534 = vunpack.c.0.s8 %v338
    %v535 = vunpack.c.0.s8 %v339
    %v536 = vunpack.c.0.s8 %v340
    %v537 = vunpack.c.1.s8 %v337
    %v538 = vunpack.c.1.s8 %v338
    %v539 = vunpack.c.1.s8 %v339
    %v540 = vunpack.c.1.s8 %v340
    %v541 = vunpack.c.2.s8 %v337
    %v542 = vunpack.c.2.s8 %v338
    %v543 = vunpack.c.2.s8 %v339
    %v544 = vunpack.c.2.s8 %v340
    %v545 = vunpack.c.3.s8 %v337
    %v546 = vunpack.c.3.s8 %v338
    %v547 = vunpack.c.3.s8 %v339
    %v548 = vunpack.c.3.s8 %v340
    %v549 = vunpack.c.0.s8 %v341
    %v550 = vunpack.c.0.s8 %v342
    %v551 = vunpack.c.0.s8 %v343
    %v552 = vunpack.c.0.s8 %v344
    %v553 = vunpack.c.1.s8 %v341
    %v554 = vunpack.c.1.s8 %v342
    %v555 = vunpack.c.1.s8 %v343
    %v556 = vunpack.c.1.s8 %v344
    %v557 = vunpack.c.2.s8 %v341
    %v558 = vunpack.c.2.s8 %v342
    %v559 = vunpack.c.2.s8 %v343
    %v560 = vunpack.c.2.s8 %v344
    %v561 = vunpack.c.3.s8 %v341
    %v562 = vunpack.c.3.s8 %v342
    %v563 = vunpack.c.3.s8 %v343
    %v564 = vunpack.c.3.s8 %v344
    %v565 = vunpack.c.0.s8 %v345
    %v566 = vunpack.c.0.s8 %v346
    %v567 = vunpack.c.0.s8 %v347
    %v568 = vunpack.c.0.s8 %v348
    %v569 = vunpack.c.1.s8 %v345
    %v570 = vunpack.c.1.s8 %v346
    %v571 = vunpack.c.1.s8 %v347
    %v572 = vunpack.c.1.s8 %v348
    %v573 = vunpack.c.2.s8 %v345
    %v574 = vunpack.c.2.s8 %v346
    %v575 = vunpack.c.2.s8 %v347
    %v576 = vunpack.c.2.s8 %v348
    %v577 = vunpack.c.3.s8 %v345
    %v578 = vunpack.c.3.s8 %v346
    %v579 = vunpack.c.3.s8 %v347
    %v580 = vunpack.c.3.s8 %v348
    %v581 = vunpack.c.0.s8 %v349
    %v582 = vunpack.c.0.s8 %v350
    %v583 = vunpack.c.0.s8 %v351
    %v584 = vunpack.c.0.s8 %v352
    %v585 = vunpack.c.1.s8 %v349
    %v586 = vunpack.c.1.s8 %v350
    %v587 = vunpack.c.1.s8 %v351
    %v588 = vunpack.c.1.s8 %v352
    %v589 = vunpack.c.2.s8 %v349
    %v590 = vunpack.c.2.s8 %v350
    %v591 = vunpack.c.2.s8 %v351
    %v592 = vunpack.c.2.s8 %v352
    %v593 = vunpack.c.3.s8 %v349
    %v594 = vunpack.c.3.s8 %v350
    %v595 = vunpack.c.3.s8 %v351
    %v596 = vunpack.c.3.s8 %v352
    %v597 = vunpack.c.0.s8 %v353
    %v598 = vunpack.c.0.s8 %v354
    %v599 = vunpack.c.0.s8 %v355
    %v600 = vunpack.c.0.s8 %v356
    %v601 = vunpack.c.1.s8 %v353
    %v602 = vunpack.c.1.s8 %v354
    %v603 = vunpack.c.1.s8 %v355
    %v604 = vunpack.c.1.s8 %v356
    %v605 = vunpack.c.2.s8 %v353
    %v606 = vunpack.c.2.s8 %v354
    %v607 = vunpack.c.2.s8 %v355
    %v608 = vunpack.c.2.s8 %v356
    %v609 = vunpack.c.3.s8 %v353
    %v610 = vunpack.c.3.s8 %v354
    %v611 = vunpack.c.3.s8 %v355
    %v612 = vunpack.c.3.s8 %v356
    %v613 = vcvt.s32.f32 %v357
    %v614 = vcvt.s32.f32 %v358
    %v615 = vcvt.s32.f32 %v359
    %v616 = vcvt.s32.f32 %v360
    %v617 = vcvt.s32.f32 %v361
    %v618 = vcvt.s32.f32 %v362
    %v619 = vcvt.s32.f32 %v363
    %v620 = vcvt.s32.f32 %v364
    %v621 = vcvt.s32.f32 %v365
    %v622 = vcvt.s32.f32 %v366
    %v623 = vcvt.s32.f32 %v367
    %v624 = vcvt.s32.f32 %v368
    %v625 = vcvt.s32.f32 %v369
    %v626 = vcvt.s32.f32 %v370
    %v627 = vcvt.s32.f32 %v371
    %v628 = vcvt.s32.f32 %v372
    %v629 = vcvt.s32.f32 %v373
    %v630 = vcvt.s32.f32 %v374
    %v631 = vcvt.s32.f32 %v375
    %v632 = vcvt.s32.f32 %v376
    %v633 = vcvt.s32.f32 %v377
    %v634 = vcvt.s32.f32 %v378
    %v635 = vcvt.s32.f32 %v379
    %v636 = vcvt.s32.f32 %v380
    %v637 = vcvt.s32.f32 %v381
    %v638 = vcvt.s32.f32 %v382
    %v639 = vcvt.s32.f32 %v383
    %v640 = vcvt.s32.f32 %v384
    %v641 = vcvt.s32.f32 %v385
    %v642 = vcvt.s32.f32 %v386
    %v643 = vcvt.s32.f32 %v387
    %v644 = vcvt.s32.f32 %v388
    %v645 = vcvt.s32.f32 %v389
    %v646 = vcvt.s32.f32 %v390
    %v647 = vcvt.s32.f32 %v391
    %v648 = vcvt.s32.f32 %v392
    %v649 = vcvt.s32.f32 %v393
    %v650 = vcvt.s32.f32 %v394
    %v651 = vcvt.s32.f32 %v395
    %v652 = vcvt.s32.f32 %v396
    %v653 = vcvt.s32.f32 %v397
    %v654 = vcvt.s32.f32 %v398
    %v655 = vcvt.s32.f32 %v399
    %v656 = vcvt.s32.f32 %v400
    %v657 = vcvt.s32.f32 %v401
    %v658 = vcvt.s32.f32 %v402
    %v659 = vcvt.s32.f32 %v403
    %v660 = vcvt.s32.f32 %v404
    %v661 = vcvt.s32.f32 %v405
    %v662 = vcvt.s32.f32 %v406
    %v663 = vcvt.s32.f32 %v407
    %v664 = vcvt.s32.f32 %v408
    %v665 = vcvt.s32.f32 %v409
    %v666 = vcvt.s32.f32 %v410
    %v667 = vcvt.s32.f32 %v411
    %v668 = vcvt.s32.f32 %v412
    %v669 = vcvt.s32.f32 %v413
    %v670 = vcvt.s32.f32 %v414
    %v671 = vcvt.s32.f32 %v415
    %v672 = vcvt.s32.f32 %v416
    %v673 = vcvt.s32.f32 %v417
    %v674 = vcvt.s32.f32 %v418
    %v675 = vcvt.s32.f32 %v419
    %v676 = vcvt.s32.f32 %v420
    %v677 = vcvt.s32.f32 %v421
    %v678 = vcvt.s32.f32 %v422
    %v679 = vcvt.s32.f32 %v423
    %v680 = vcvt.s32.f32 %v424
    %v681 = vcvt.s32.f32 %v425
    %v682 = vcvt.s32.f32 %v426
    %v683 = vcvt.s32.f32 %v427
    %v684 = vcvt.s32.f32 %v428
    %v685 = vcvt.s32.f32 %v429
    %v686 = vcvt.s32.f32 %v430
    %v687 = vcvt.s32.f32 %v431
    %v688 = vcvt.s32.f32 %v432
    %v689 = vcvt.s32.f32 %v433
    %v690 = vcvt.s32.f32 %v434
    %v691 = vcvt.s32.f32 %v435
    %v692 = vcvt.s32.f32 %v436
    %v693 = vcvt.s32.f32 %v437
    %v694 = vcvt.s32.f32 %v438
    %v695 = vcvt.s32.f32 %v439
    %v696 = vcvt.s32.f32 %v440
    %v697 = vcvt.s32.f32 %v441
    %v698 = vcvt.s32.f32 %v442
    %v699 = vcvt.s32.f32 %v443
    %v700 = vcvt.s32.f32 %v444
    %v701 = vcvt.s32.f32 %v445
    %v702 = vcvt.s32.f32 %v446
    %v703 = vcvt.s32.f32 %v447
    %v704 = vcvt.s32.f32 %v448
    %v705 = vcvt.s32.f32 %v449
    %v706 = vcvt.s32.f32 %v450
    %v707 = vcvt.s32.f32 %v451
    %v708 = vcvt.s32.f32 %v452
    %v709 = vcvt.s32.f32 %v453
    %v710 = vcvt.s32.f32 %v454
    %v711 = vcvt.s32.f32 %v455
    %v712 = vcvt.s32.f32 %v456
    %v713 = vcvt.s32.f32 %v457
    %v714 = vcvt.s32.f32 %v458
    %v715 = vcvt.s32.f32 %v459
    %v716 = vcvt.s32.f32 %v460
    %v717 = vcvt.s32.f32 %v461
    %v718 = vcvt.s32.f32 %v462
    %v719 = vcvt.s32.f32 %v463
    %v720 = vcvt.s32.f32 %v464
    %v721 = vcvt.s32.f32 %v465
    %v722 = vcvt.s32.f32 %v466
    %v723 = vcvt.s32.f32 %v467
    %v724 = vcvt.s32.f32 %v468
    %v725 = vcvt.s32.f32 %v469
    %v726 = vcvt.s32.f32 %v470
    %v727 = vcvt.s32.f32 %v471
    %v728 = vcvt.s32.f32 %v472
    %v729 = vcvt.s32.f32 %v473
    %v730 = vcvt.s32.f32 %v474
    %v731 = vcvt.s32.f32 %v475
    %v732 = vcvt.s32.f32 %v476
    %v733 = vcvt.s32.f32 %v477
    %v734 = vcvt.s32.f32 %v478
    %v735 = vcvt.s32.f32 %v479
    %v736 = vcvt.s32.f32 %v480
    %v737 = vcvt.s32.f32 %v481
    %v738 = vcvt.s32.f32 %v482
    %v739 = vcvt.s32.f32 %v483
    %v740 = vcvt.s32.f32 %v484
    %v741 = vcvt.s32.f32 %v485
    %v742 = vcvt.s32.f32 %v486
    %v743 = vcvt.s32.f32 %v487
    %v744 = vcvt.s32.f32 %v488
    %v745 = vcvt.s32.f32 %v489
    %v746 = vcvt.s32.f32 %v490
    %v747 = vcvt.s32.f32 %v491
    %v748 = vcvt.s32.f32 %v492
    %v749 = vcvt.s32.f32 %v493
    %v750 = vcvt.s32.f32 %v494
    %v751 = vcvt.s32.f32 %v495
    %v752 = vcvt.s32.f32 %v496
    %v753 = vcvt.s32.f32 %v497
    %v754 = vcvt.s32.f32 %v498
    %v755 = vcvt.s32.f32 %v499
    %v756 = vcvt.s32.f32 %v500
    %v757 = vcvt.s32.f32 %v501
    %v758 = vcvt.s32.f32 %v502
    %v759 = vcvt.s32.f32 %v503
    %v760 = vcvt.s32.f32 %v504
    %v761 = vcvt.s32.f32 %v505
    %v762 = vcvt.s32.f32 %v506
    %v763 = vcvt.s32.f32 %v507
    %v764 = vcvt.s32.f32 %v508
    %v765 = vcvt.s32.f32 %v509
    %v766 = vcvt.s32.f32 %v510
    %v767 = vcvt.s32.f32 %v511
    %v768 = vcvt.s32.f32 %v512
    %v769 = vcvt.s32.f32 %v513
    %v770 = vcvt.s32.f32 %v514
    %v771 = vcvt.s32.f32 %v515
    %v772 = vcvt.s32.f32 %v516
    %v773 = vcvt.s32.f32 %v517
    %v774 = vcvt.s32.f32 %v518
    %v775 = vcvt.s32.f32 %v519
    %v776 = vcvt.s32.f32 %v520
    %v777 = vcvt.s32.f32 %v521
    %v778 = vcvt.s32.f32 %v522
    %v779 = vcvt.s32.f32 %v523
    %v780 = vcvt.s32.f32 %v524
    %v781 = vcvt.s32.f32 %v525
    %v782 = vcvt.s32.f32 %v526
    %v783 = vcvt.s32.f32 %v527
    %v784 = vcvt.s32.f32 %v528
    %v785 = vcvt.s32.f32 %v529
    %v786 = vcvt.s32.f32 %v530
    %v787 = vcvt.s32.f32 %v531
    %v788 = vcvt.s32.f32 %v532
    %v789 = vcvt.s32.f32 %v533
    %v790 = vcvt.s32.f32 %v534
    %v791 = vcvt.s32.f32 %v535
    %v792 = vcvt.s32.f32 %v536
    %v793 = vcvt.s32.f32 %v537
    %v794 = vcvt.s32.f32 %v538
    %v795 = vcvt.s32.f32 %v539
    %v796 = vcvt.s32.f32 %v540
    %v797 = vcvt.s32.f32 %v541
    %v798 = vcvt.s32.f32 %v542
    %v799 = vcvt.s32.f32 %v543
    %v800 = vcvt.s32.f32 %v544
    %v801 = vcvt.s32.f32 %v545
    %v802 = vcvt.s32.f32 %v546
    %v803 = vcvt.s32.f32 %v547
    %v804 = vcvt.s32.f32 %v548
    %v805 = vcvt.s32.f32 %v549
    %v806 = vcvt.s32.f32 %v550
    %v807 = vcvt.s32.f32 %v551
    %v808 = vcvt.s32.f32 %v552
    %v809 = vcvt.s32.f32 %v553
    %v810 = vcvt.s32.f32 %v554
    %v811 = vcvt.s32.f32 %v555
    %v812 = vcvt.s32.f32 %v556
    %v813 = vcvt.s32.f32 %v557
    %v814 = vcvt.s32.f32 %v558
    %v815 = vcvt.s32.f32 %v559
    %v816 = vcvt.s32.f32 %v560
    %v817 = vcvt.s32.f32 %v561
    %v818 = vcvt.s32.f32 %v562
    %v819 = vcvt.s32.f32 %v563
    %v820 = vcvt.s32.f32 %v564
    %v821 = vcvt.s32.f32 %v565
    %v822 = vcvt.s32.f32 %v566
    %v823 = vcvt.s32.f32 %v567
    %v824 = vcvt.s32.f32 %v568
    %v825 = vcvt.s32.f32 %v569
    %v826 = vcvt.s32.f32 %v570
    %v827 = vcvt.s32.f32 %v571
    %v828 = vcvt.s32.f32 %v572
    %v829 = vcvt.s32.f32 %v573
    %v830 = vcvt.s32.f32 %v574
    %v831 = vcvt.s32.f32 %v575
    %v832 = vcvt.s32.f32 %v576
    %v833 = vcvt.s32.f32 %v577
    %v834 = vcvt.s32.f32 %v578
    %v835 = vcvt.s32.f32 %v579
    %v836 = vcvt.s32.f32 %v580
    %v837 = vcvt.s32.f32 %v581
    %v838 = vcvt.s32.f32 %v582
    %v839 = vcvt.s32.f32 %v583
    %v840 = vcvt.s32.f32 %v584
    %v841 = vcvt.s32.f32 %v585
    %v842 = vcvt.s32.f32 %v586
    %v843 = vcvt.s32.f32 %v587
    %v844 = vcvt.s32.f32 %v588
    %v845 = vcvt.s32.f32 %v589
    %v846 = vcvt.s32.f32 %v590
    %v847 = vcvt.s32.f32 %v591
    %v848 = vcvt.s32.f32 %v592
    %v849 = vcvt.s32.f32 %v593
    %v850 = vcvt.s32.f32 %v594
    %v851 = vcvt.s32.f32 %v595
    %v852 = vcvt.s32.f32 %v596
    %v853 = vcvt.s32.f32 %v597
    %v854 = vcvt.s32.f32 %v598
    %v855 = vcvt.s32.f32 %v599
    %v856 = vcvt.s32.f32 %v600
    %v857 = vcvt.s32.f32 %v601
    %v858 = vcvt.s32.f32 %v602
    %v859 = vcvt.s32.f32 %v603
    %v860 = vcvt.s32.f32 %v604
    %v861 = vcvt.s32.f32 %v605
    %v862 = vcvt.s32.f32 %v606
    %v863 = vcvt.s32.f32 %v607
    %v864 = vcvt.s32.f32 %v608
    %v865 = vcvt.s32.f32 %v609
    %v866 = vcvt.s32.f32 %v610
    %v867 = vcvt.s32.f32 %v611
    %v868 = vcvt.s32.f32 %v612
    %v869 = vpack.c.bf16 %v617, %v613
    %v870 = vpack.c.bf16 %v618, %v614
    %v871 = vpack.c.bf16 %v619, %v615
    %v872 = vpack.c.bf16 %v620, %v616
    %v873 = vpack.c.bf16 %v625, %v621
    %v874 = vpack.c.bf16 %v626, %v622
    %v875 = vpack.c.bf16 %v627, %v623
    %v876 = vpack.c.bf16 %v628, %v624
    %v877 = vpack.c.bf16 %v633, %v629
    %v878 = vpack.c.bf16 %v634, %v630
    %v879 = vpack.c.bf16 %v635, %v631
    %v880 = vpack.c.bf16 %v636, %v632
    %v881 = vpack.c.bf16 %v641, %v637
    %v882 = vpack.c.bf16 %v642, %v638
    %v883 = vpack.c.bf16 %v643, %v639
    %v884 = vpack.c.bf16 %v644, %v640
    %v885 = vpack.c.bf16 %v649, %v645
    %v886 = vpack.c.bf16 %v650, %v646
    %v887 = vpack.c.bf16 %v651, %v647
    %v888 = vpack.c.bf16 %v652, %v648
    %v889 = vpack.c.bf16 %v657, %v653
    %v890 = vpack.c.bf16 %v658, %v654
    %v891 = vpack.c.bf16 %v659, %v655
    %v892 = vpack.c.bf16 %v660, %v656
    %v893 = vpack.c.bf16 %v665, %v661
    %v894 = vpack.c.bf16 %v666, %v662
    %v895 = vpack.c.bf16 %v667, %v663
    %v896 = vpack.c.bf16 %v668, %v664
    %v897 = vpack.c.bf16 %v673, %v669
    %v898 = vpack.c.bf16 %v674, %v670
    %v899 = vpack.c.bf16 %v675, %v671
    %v900 = vpack.c.bf16 %v676, %v672
    %v901 = vpack.c.bf16 %v681, %v677
    %v902 = vpack.c.bf16 %v682, %v678
    %v903 = vpack.c.bf16 %v683, %v679
    %v904 = vpack.c.bf16 %v684, %v680
    %v905 = vpack.c.bf16 %v689, %v685
    %v906 = vpack.c.bf16 %v690, %v686
    %v907 = vpack.c.bf16 %v691, %v687
    %v908 = vpack.c.bf16 %v692, %v688
    %v909 = vpack.c.bf16 %v697, %v693
    %v910 = vpack.c.bf16 %v698, %v694
    %v911 = vpack.c.bf16 %v699, %v695
    %v912 = vpack.c.bf16 %v700, %v696
    %v913 = vpack.c.bf16 %v705, %v701
    %v914 = vpack.c.bf16 %v706, %v702
    %v915 = vpack.c.bf16 %v707, %v703
    %v916 = vpack.c.bf16 %v708, %v704
    %v917 = vpack.c.bf16 %v713, %v709
    %v918 = vpack.c.bf16 %v714, %v710
    %v919 = vpack.c.bf16 %v715, %v711
    %v920 = vpack.c.bf16 %v716, %v712
    %v921 = vpack.c.bf16 %v721, %v717
    %v922 = vpack.c.bf16 %v722, %v718
    %v923 = vpack.c.bf16 %v723, %v719
    %v924 = vpack.c.bf16 %v724, %v720
    %v925 = vpack.c.bf16 %v729, %v725
    %v926 = vpack.c.bf16 %v730, %v726
    %v927 = vpack.c.bf16 %v731, %v727
    %v928 = vpack.c.bf16 %v732, %v728
    %v929 = vpack.c.bf16 %v737, %v733
    %v930 = vpack.c.bf16 %v738, %v734
    %v931 = vpack.c.bf16 %v739, %v735
    %v932 = vpack.c.bf16 %v740, %v736
    %v933 = vpack.c.bf16 %v745, %v741
    %v934 = vpack.c.bf16 %v746, %v742
    %v935 = vpack.c.bf16 %v747, %v743
    %v936 = vpack.c.bf16 %v748, %v744
    %v937 = vpack.c.bf16 %v753, %v749
    %v938 = vpack.c.bf16 %v754, %v750
    %v939 = vpack.c.bf16 %v755, %v751
    %v940 = vpack.c.bf16 %v756, %v752
    %v941 = vpack.c.bf16 %v761, %v757
    %v942 = vpack.c.bf16 %v762, %v758
    %v943 = vpack.c.bf16 %v763, %v759
    %v944 = vpack.c.bf16 %v764, %v760
    %v945 = vpack.c.bf16 %v769, %v765
    %v946 = vpack.c.bf16 %v770, %v766
    %v947 = vpack.c.bf16 %v771, %v767
    %v948 = vpack.c.bf16 %v772, %v768
    %v949 = vpack.c.bf16 %v777, %v773
    %v950 = vpack.c.bf16 %v778, %v774
    %v951 = vpack.c.bf16 %v779, %v775
    %v952 = vpack.c.bf16 %v780, %v776
    %v953 = vpack.c.bf16 %v785, %v781
    %v954 = vpack.c.bf16 %v786, %v782
    %v955 = vpack.c.bf16 %v787, %v783
    %v956 = vpack.c.bf16 %v788, %v784
    %v957 = vpack.c.bf16 %v793, %v789
    %v958 = vpack.c.bf16 %v794, %v790
    %v959 = vpack.c.bf16 %v795, %v791
    %v960 = vpack.c.bf16 %v796, %v792
    %v961 = vpack.c.bf16 %v801, %v797
    %v962 = vpack.c.bf16 %v802, %v798
    %v963 = vpack.c.bf16 %v803, %v799
    %v964 = vpack.c.bf16 %v804, %v800
    %v965 = vpack.c.bf16 %v809, %v805
    %v966 = vpack.c.bf16 %v810, %v806
    %v967 = vpack.c.bf16 %v811, %v807
    %v968 = vpack.c.bf16 %v812, %v808
    %v969 = vpack.c.bf16 %v817, %v813
    %v970 = vpack.c.bf16 %v818, %v814
    %v971 = vpack.c.bf16 %v819, %v815
    %v972 = vpack.c.bf16 %v820, %v816
    %v973 = vpack.c.bf16 %v825, %v821
    %v974 = vpack.c.bf16 %v826, %v822
    %v975 = vpack.c.bf16 %v827, %v823
    %v976 = vpack.c.bf16 %v828, %v824
    %v977 = vpack.c.bf16 %v833, %v829
    %v978 = vpack.c.bf16 %v834, %v830
    %v979 = vpack.c.bf16 %v835, %v831
    %v980 = vpack.c.bf16 %v836, %v832
    %v981 = vpack.c.bf16 %v841, %v837
    %v982 = vpack.c.bf16 %v842, %v838
    %v983 = vpack.c.bf16 %v843, %v839
    %v984 = vpack.c.bf16 %v844, %v840
    %v985 = vpack.c.bf16 %v849, %v845
    %v986 = vpack.c.bf16 %v850, %v846
    %v987 = vpack.c.bf16 %v851, %v847
    %v988 = vpack.c.bf16 %v852, %v848
    %v989 = vpack.c.bf16 %v857, %v853
    %v990 = vpack.c.bf16 %v858, %v854
    %v991 = vpack.c.bf16 %v859, %v855
    %v992 = vpack.c.bf16 %v860, %v856
    %v993 = vpack.c.bf16 %v865, %v861
    %v994 = vpack.c.bf16 %v866, %v862
    %v995 = vpack.c.bf16 %v867, %v863
    %v996 = vpack.c.bf16 %v868, %v864
    %v997 = vpack.c.bf16 %v289, %v285
    %v998 = vpack.c.bf16 %v290, %v286
    %v999 = vpack.c.bf16 %v291, %v287
    %v1000 = vpack.c.bf16 %v292, %v288
    %1001 = vmatpush.bf16.msra.mxu0 %v897
    %1002 = vmatpush.bf16.msra.mxu0 %v893
    %1003 = vmatpush.bf16.msra.mxu0 %v889
    %1004 = vmatpush.bf16.msra.mxu0 %v885
    %1005 = vmatpush.bf16.msra.mxu0 %v881
    %1006 = vmatpush.bf16.msra.mxu0 %v877
    %1007 = vmatpush.bf16.msra.mxu0 %v873
    %1008 = vmatpush.bf16.msra.mxu0 %v869
    %1009 = vmatmul.bf16.gmra.mxu0 %v997
    %v1010 = vpop.f32.mrf.mxu0
    %v1011 = vadd.f32 0.0, %v1010
    %v1012 = vpop.f32.mrf.mxu0
    %v1013 = vadd.f32 0.0, %v1012
    %1014 = vdwg.mxu0
    %1015 = vmatpush.bf16.msra.mxu0 %v929
    %1016 = vmatpush.bf16.msra.mxu0 %v925
    %1017 = vmatpush.bf16.msra.mxu0 %v921
    %1018 = vmatpush.bf16.msra.mxu0 %v917
    %1019 = vmatpush.bf16.msra.mxu0 %v913
    %1020 = vmatpush.bf16.msra.mxu0 %v909
    %1021 = vmatpush.bf16.msra.mxu0 %v905
    %1022 = vmatpush.bf16.msra.mxu0 %v901
    %1023 = vmatmul.bf16.gmra.mxu0 %v998
    %v1024 = vpop.f32.mrf.mxu0
    %v1025 = vadd.f32 %v1011, %v1024
    %v1026 = vpop.f32.mrf.mxu0
    %v1027 = vadd.f32 %v1013, %v1026
    %1028 = vdwg.mxu0
    %1029 = vmatpush.bf16.msra.mxu0 %v961
    %1030 = vmatpush.bf16.msra.mxu0 %v957
    %1031 = vmatpush.bf16.msra.mxu0 %v953
    %1032 = vmatpush.bf16.msra.mxu0 %v949
    %1033 = vmatpush.bf16.msra.mxu0 %v945
    %1034 = vmatpush.bf16.msra.mxu0 %v941
    %1035 = vmatpush.bf16.msra.mxu0 %v937
    %1036 = vmatpush.bf16.msra.mxu0 %v933
    %1037 = vmatmul.bf16.gmra.mxu0 %v999
    %v1038 = vpop.f32.mrf.mxu0
    %v1039 = vadd.f32 %v1025, %v1038
    %v1040 = vpop.f32.mrf.mxu0
    %v1041 = vadd.f32 %v1027, %v1040
    %1042 = vdwg.mxu0
    %1043 = vmatpush.bf16.msra.mxu0 %v993
    %1044 = vmatpush.bf16.msra.mxu0 %v989
    %1045 = vmatpush.bf16.msra.mxu0 %v985
    %1046 = vmatpush.bf16.msra.mxu0 %v981
    %1047 = vmatpush.bf16.msra.mxu0 %v977
    %1048 = vmatpush.bf16.msra.mxu0 %v973
    %1049 = vmatpush.bf16.msra.mxu0 %v969
    %1050 = vmatpush.bf16.msra.mxu0 %v965
    %1051 = vmatmul.bf16.gmra.mxu0 %v1000
    %v1052 = vpop.f32.mrf.mxu0
    %v1053 = vadd.f32 %v1039, %v1052
    %v1054 = vpop.f32.mrf.mxu0
    %v1055 = vadd.f32 %v1041, %v1054
    %1056 = vdwg.mxu0
    %1057 = vmatpush.bf16.msra.mxu0 %v898
    %1058 = vmatpush.bf16.msra.mxu0 %v894
    %1059 = vmatpush.bf16.msra.mxu0 %v890
    %1060 = vmatpush.bf16.msra.mxu0 %v886
    %1061 = vmatpush.bf16.msra.mxu0 %v882
    %1062 = vmatpush.bf16.msra.mxu0 %v878
    %1063 = vmatpush.bf16.msra.mxu0 %v874
    %1064 = vmatpush.bf16.msra.mxu0 %v870
    %1065 = vmatmul.bf16.gmra.mxu0 %v997
    %v1066 = vpop.f32.mrf.mxu0
    %v1067 = vadd.f32 0.0, %v1066
    %v1068 = vpop.f32.mrf.mxu0
    %v1069 = vadd.f32 0.0, %v1068
    %1070 = vdwg.mxu0
    %1071 = vmatpush.bf16.msra.mxu0 %v930
    %1072 = vmatpush.bf16.msra.mxu0 %v926
    %1073 = vmatpush.bf16.msra.mxu0 %v922
    %1074 = vmatpush.bf16.msra.mxu0 %v918
    %1075 = vmatpush.bf16.msra.mxu0 %v914
    %1076 = vmatpush.bf16.msra.mxu0 %v910
    %1077 = vmatpush.bf16.msra.mxu0 %v906
    %1078 = vmatpush.bf16.msra.mxu0 %v902
    %1079 = vmatmul.bf16.gmra.mxu0 %v998
    %v1080 = vpop.f32.mrf.mxu0
    %v1081 = vadd.f32 %v1067, %v1080
    %v1082 = vpop.f32.mrf.mxu0
    %v1083 = vadd.f32 %v1069, %v1082
    %1084 = vdwg.mxu0
    %1085 = vmatpush.bf16.msra.mxu0 %v962
    %1086 = vmatpush.bf16.msra.mxu0 %v958
    %1087 = vmatpush.bf16.msra.mxu0 %v954
    %1088 = vmatpush.bf16.msra.mxu0 %v950
    %1089 = vmatpush.bf16.msra.mxu0 %v946
    %1090 = vmatpush.bf16.msra.mxu0 %v942
    %1091 = vmatpush.bf16.msra.mxu0 %v938
    %1092 = vmatpush.bf16.msra.mxu0 %v934
    %1093 = vmatmul.bf16.gmra.mxu0 %v999
    %v1094 = vpop.f32.mrf.mxu0
    %v1095 = vadd.f32 %v1081, %v1094
    %v1096 = vpop.f32.mrf.mxu0
    %v1097 = vadd.f32 %v1083, %v1096
    %1098 = vdwg.mxu0
    %1099 = vmatpush.bf16.msra.mxu0 %v994
    %1100 = vmatpush.bf16.msra.mxu0 %v990
    %1101 = vmatpush.bf16.msra.mxu0 %v986
    %1102 = vmatpush.bf16.msra.mxu0 %v982
    %1103 = vmatpush.bf16.msra.mxu0 %v978
    %1104 = vmatpush.bf16.msra.mxu0 %v974
    %1105 = vmatpush.bf16.msra.mxu0 %v970
    %1106 = vmatpush.bf16.msra.mxu0 %v966
    %1107 = vmatmul.bf16.gmra.mxu0 %v1000
    %v1108 = vpop.f32.mrf.mxu0
    %v1109 = vadd.f32 %v1095, %v1108
    %v1110 = vpop.f32.mrf.mxu0
    %v1111 = vadd.f32 %v1097, %v1110
    %1112 = vdwg.mxu0
    %1113 = vmatpush.bf16.msra.mxu0 %v899
    %1114 = vmatpush.bf16.msra.mxu0 %v895
    %1115 = vmatpush.bf16.msra.mxu0 %v891
    %1116 = vmatpush.bf16.msra.mxu0 %v887
    %1117 = vmatpush.bf16.msra.mxu0 %v883
    %1118 = vmatpush.bf16.msra.mxu0 %v879
    %1119 = vmatpush.bf16.msra.mxu0 %v875
    %1120 = vmatpush.bf16.msra.mxu0 %v871
    %1121 = vmatmul.bf16.gmra.mxu0 %v997
    %v1122 = vpop.f32.mrf.mxu0
    %v1123 = vadd.f32 0.0, %v1122
    %v1124 = vpop.f32.mrf.mxu0
    %v1125 = vadd.f32 0.0, %v1124
    %1126 = vdwg.mxu0
    %1127 = vmatpush.bf16.msra.mxu0 %v931
    %1128 = vmatpush.bf16.msra.mxu0 %v927
    %1129 = vmatpush.bf16.msra.mxu0 %v923
    %1130 = vmatpush.bf16.msra.mxu0 %v919
    %1131 = vmatpush.bf16.msra.mxu0 %v915
    %1132 = vmatpush.bf16.msra.mxu0 %v911
    %1133 = vmatpush.bf16.msra.mxu0 %v907
    %1134 = vmatpush.bf16.msra.mxu0 %v903
    %1135 = vmatmul.bf16.gmra.mxu0 %v998
    %v1136 = vpop.f32.mrf.mxu0
    %v1137 = vadd.f32 %v1123, %v1136
    %v1138 = vpop.f32.mrf.mxu0
    %v1139 = vadd.f32 %v1125, %v1138
    %1140 = vdwg.mxu0
    %1141 = vmatpush.bf16.msra.mxu0 %v963
    %1142 = vmatpush.bf16.msra.mxu0 %v959
    %1143 = vmatpush.bf16.msra.mxu0 %v955
    %1144 = vmatpush.bf16.msra.mxu0 %v951
    %1145 = vmatpush.bf16.msra.mxu0 %v947
    %1146 = vmatpush.bf16.msra.mxu0 %v943
    %1147 = vmatpush.bf16.msra.mxu0 %v939
    %1148 = vmatpush.bf16.msra.mxu0 %v935
    %1149 = vmatmul.bf16.gmra.mxu0 %v999
    %v1150 = vpop.f32.mrf.mxu0
    %v1151 = vadd.f32 %v1137, %v1150
    %v1152 = vpop.f32.mrf.mxu0
    %v1153 = vadd.f32 %v1139, %v1152
    %1154 = vdwg.mxu0
    %1155 = vmatpush.bf16.msra.mxu0 %v995
    %1156 = vmatpush.bf16.msra.mxu0 %v991
    %1157 = vmatpush.bf16.msra.mxu0 %v987
    %1158 = vmatpush.bf16.msra.mxu0 %v983
    %1159 = vmatpush.bf16.msra.mxu0 %v979
    %1160 = vmatpush.bf16.msra.mxu0 %v975
    %1161 = vmatpush.bf16.msra.mxu0 %v971
    %1162 = vmatpush.bf16.msra.mxu0 %v967
    %1163 = vmatmul.bf16.gmra.mxu0 %v1000
    %v1164 = vpop.f32.mrf.mxu0
    %v1165 = vadd.f32 %v1151, %v1164
    %v1166 = vpop.f32.mrf.mxu0
    %v1167 = vadd.f32 %v1153, %v1166
    %1168 = vdwg.mxu0
    %1169 = vmatpush.bf16.msra.mxu0 %v900
    %1170 = vmatpush.bf16.msra.mxu0 %v896
    %1171 = vmatpush.bf16.msra.mxu0 %v892
    %1172 = vmatpush.bf16.msra.mxu0 %v888
    %1173 = vmatpush.bf16.msra.mxu0 %v884
    %1174 = vmatpush.bf16.msra.mxu0 %v880
    %1175 = vmatpush.bf16.msra.mxu0 %v876
    %1176 = vmatpush.bf16.msra.mxu0 %v872
    %1177 = vmatmul.bf16.gmra.mxu0 %v997
    %v1178 = vpop.f32.mrf.mxu0
    %v1179 = vadd.f32 0.0, %v1178
    %v1180 = vpop.f32.mrf.mxu0
    %v1181 = vadd.f32 0.0, %v1180
    %1182 = vdwg.mxu0
    %1183 = vmatpush.bf16.msra.mxu0 %v932
    %1184 = vmatpush.bf16.msra.mxu0 %v928
    %1185 = vmatpush.bf16.msra.mxu0 %v924
    %1186 = vmatpush.bf16.msra.mxu0 %v920
    %1187 = vmatpush.bf16.msra.mxu0 %v916
    %1188 = vmatpush.bf16.msra.mxu0 %v912
    %1189 = vmatpush.bf16.msra.mxu0 %v908
    %1190 = vmatpush.bf16.msra.mxu0 %v904
    %1191 = vmatmul.bf16.gmra.mxu0 %v998
    %v1192 = vpop.f32.mrf.mxu0
    %v1193 = vadd.f32 %v1179, %v1192
    %v1194 = vpop.f32.mrf.mxu0
    %v1195 = vadd.f32 %v1181, %v1194
    %1196 = vdwg.mxu0
    %1197 = vmatpush.bf16.msra.mxu0 %v964
    %1198 = vmatpush.bf16.msra.mxu0 %v960
    %1199 = vmatpush.bf16.msra.mxu0 %v956
    %1200 = vmatpush.bf16.msra.mxu0 %v952
    %1201 = vmatpush.bf16.msra.mxu0 %v948
    %1202 = vmatpush.bf16.msra.mxu0 %v944
    %1203 = vmatpush.bf16.msra.mxu0 %v940
    %1204 = vmatpush.bf16.msra.mxu0 %v936
    %1205 = vmatmul.bf16.gmra.mxu0 %v999
    %v1206 = vpop.f32.mrf.mxu0
    %v1207 = vadd.f32 %v1193, %v1206
    %v1208 = vpop.f32.mrf.mxu0
    %v1209 = vadd.f32 %v1195, %v1208
    %1210 = vdwg.mxu0
    %1211 = vmatpush.bf16.msra.mxu0 %v996
    %1212 = vmatpush.bf16.msra.mxu0 %v992
    %1213 = vmatpush.bf16.msra.mxu0 %v988
    %1214 = vmatpush.bf16.msra.mxu0 %v984
    %1215 = vmatpush.bf16.msra.mxu0 %v980
    %1216 = vmatpush.bf16.msra.mxu0 %v976
    %1217 = vmatpush.bf16.msra.mxu0 %v972
    %1218 = vmatpush.bf16.msra.mxu0 %v968
    %1219 = vmatmul.bf16.gmra.mxu0 %v1000
    %v1220 = vpop.f32.mrf.mxu0
    %v1221 = vadd.f32 %v1207, %v1220
    %v1222 = vpop.f32.mrf.mxu0
    %v1223 = vadd.f32 %v1209, %v1222
    %1224 = vdwg.mxu0
    %v1225 = vld [vmem:[%s5] sm:$0xf]
    %v1227 = vperm.slane %v1225, 0
    %v1228 = vperm.slane %v1225, 1
    %v1229 = vperm.slane %v1225, 2
    %v1230 = vperm.slane %v1225, 3
    %v1235 = vmul.f32 %v1053, %v1227
    %v1236 = vmul.f32 %v1109, %v1228
    %v1237 = vmul.f32 %v1165, %v1229
    %v1238 = vmul.f32 %v1221, %v1230
    %v1239 = vmul.f32 %v1055, %v1227
    %v1240 = vmul.f32 %v1111, %v1228
    %v1241 = vmul.f32 %v1167, %v1229
    %v1242 = vmul.f32 %v1223, %v1230
    %v1243 = vld [vmem:[#allocation11] sm:$0xf]
    %v1245 = vperm.slane %v1243, 0
    %v1246 = vperm.slane %v1243, 1
    %v1247 = vperm.slane %v1243, 2
    %v1248 = vperm.slane %v1243, 3
    %v1253 = vadd.f32 %v1235, %v1245
    %v1254 = vadd.f32 %v1236, %v1246
    %v1255 = vadd.f32 %v1237, %v1247
    %v1256 = vadd.f32 %v1238, %v1248
    %v1257 = vadd.f32 %v1239, %v1245
    %v1258 = vadd.f32 %v1240, %v1246
    %v1259 = vadd.f32 %v1241, %v1247
    %v1260 = vadd.f32 %v1242, %v1248
    %v1261 = vmax.f32 %v1253, 0.0
    %v1262 = vmax.f32 %v1254, 0.0
    %v1263 = vmax.f32 %v1255, 0.0
    %v1264 = vmax.f32 %v1256, 0.0
    %v1265 = vmax.f32 %v1257, 0.0
    %v1266 = vmax.f32 %v1258, 0.0
    %v1267 = vmax.f32 %v1259, 0.0
    %v1268 = vmax.f32 %v1260, 0.0
    %v1269 = vld [vmem:[#allocation13] sm:$0xff]
    %v1270 = vld [vmem:[#allocation13 + $0x8] sm:$0xff]
    %v1271 = vld [vmem:[#allocation13 + $0x10] sm:$0xff]
    %v1272 = vld [vmem:[#allocation13 + $0x18] sm:$0xff]
    %v1273 = vld [vmem:[#allocation13 + $0x20] sm:$0xff]
    %v1274 = vld [vmem:[#allocation13 + $0x28] sm:$0xff]
    %v1275 = vld [vmem:[#allocation13 + $0x30] sm:$0xff]
    %v1276 = vld [vmem:[#allocation13 + $0x38] sm:$0xff]
    %v1277 = vld [vmem:[#allocation13 + $0x40] sm:$0xff]
    %v1278 = vld [vmem:[#allocation13 + $0x48] sm:$0xff]
    %v1279 = vld [vmem:[#allocation13 + $0x50] sm:$0xff]
    %v1280 = vld [vmem:[#allocation13 + $0x58] sm:$0xff]
    %v1281 = vld [vmem:[#allocation13 + $0x60] sm:$0xff]
    %v1282 = vld [vmem:[#allocation13 + $0x68] sm:$0xff]
    %v1283 = vld [vmem:[#allocation13 + $0x70] sm:$0xff]
    %v1284 = vld [vmem:[#allocation13 + $0x78] sm:$0xff]
    %v1285 = vunpack.c.0.s8 %v1269
    %v1286 = vunpack.c.1.s8 %v1269
    %v1287 = vunpack.c.2.s8 %v1269
    %v1288 = vunpack.c.3.s8 %v1269
    %v1289 = vunpack.c.0.s8 %v1270
    %v1290 = vunpack.c.1.s8 %v1270
    %v1291 = vunpack.c.2.s8 %v1270
    %v1292 = vunpack.c.3.s8 %v1270
    %v1293 = vunpack.c.0.s8 %v1271
    %v1294 = vunpack.c.1.s8 %v1271
    %v1295 = vunpack.c.2.s8 %v1271
    %v1296 = vunpack.c.3.s8 %v1271
    %v1297 = vunpack.c.0.s8 %v1272
    %v1298 = vunpack.c.1.s8 %v1272
    %v1299 = vunpack.c.2.s8 %v1272
    %v1300 = vunpack.c.3.s8 %v1272
    %v1301 = vunpack.c.0.s8 %v1273
    %v1302 = vunpack.c.1.s8 %v1273
    %v1303 = vunpack.c.2.s8 %v1273
    %v1304 = vunpack.c.3.s8 %v1273
    %v1305 = vunpack.c.0.s8 %v1274
    %v1306 = vunpack.c.1.s8 %v1274
    %v1307 = vunpack.c.2.s8 %v1274
    %v1308 = vunpack.c.3.s8 %v1274
    %v1309 = vunpack.c.0.s8 %v1275
    %v1310 = vunpack.c.1.s8 %v1275
    %v1311 = vunpack.c.2.s8 %v1275
    %v1312 = vunpack.c.3.s8 %v1275
    %v1313 = vunpack.c.0.s8 %v1276
    %v1314 = vunpack.c.1.s8 %v1276
    %v1315 = vunpack.c.2.s8 %v1276
    %v1316 = vunpack.c.3.s8 %v1276
    %v1317 = vunpack.c.0.s8 %v1277
    %v1318 = vunpack.c.1.s8 %v1277
    %v1319 = vunpack.c.2.s8 %v1277
    %v1320 = vunpack.c.3.s8 %v1277
    %v1321 = vunpack.c.0.s8 %v1278
    %v1322 = vunpack.c.1.s8 %v1278
    %v1323 = vunpack.c.2.s8 %v1278
    %v1324 = vunpack.c.3.s8 %v1278
    %v1325 = vunpack.c.0.s8 %v1279
    %v1326 = vunpack.c.1.s8 %v1279
    %v1327 = vunpack.c.2.s8 %v1279
    %v1328 = vunpack.c.3.s8 %v1279
    %v1329 = vunpack.c.0.s8 %v1280
    %v1330 = vunpack.c.1.s8 %v1280
    %v1331 = vunpack.c.2.s8 %v1280
    %v1332 = vunpack.c.3.s8 %v1280
    %v1333 = vunpack.c.0.s8 %v1281
    %v1334 = vunpack.c.1.s8 %v1281
    %v1335 = vunpack.c.2.s8 %v1281
    %v1336 = vunpack.c.3.s8 %v1281
    %v1337 = vunpack.c.0.s8 %v1282
    %v1338 = vunpack.c.1.s8 %v1282
    %v1339 = vunpack.c.2.s8 %v1282
    %v1340 = vunpack.c.3.s8 %v1282
    %v1341 = vunpack.c.0.s8 %v1283
    %v1342 = vunpack.c.1.s8 %v1283
    %v1343 = vunpack.c.2.s8 %v1283
    %v1344 = vunpack.c.3.s8 %v1283
    %v1345 = vunpack.c.0.s8 %v1284
    %v1346 = vunpack.c.1.s8 %v1284
    %v1347 = vunpack.c.2.s8 %v1284
    %v1348 = vunpack.c.3.s8 %v1284
    %v1349 = vcvt.s32.f32 %v1285
    %v1350 = vcvt.s32.f32 %v1286
    %v1351 = vcvt.s32.f32 %v1287
    %v1352 = vcvt.s32.f32 %v1288
    %v1353 = vcvt.s32.f32 %v1289
    %v1354 = vcvt.s32.f32 %v1290
    %v1355 = vcvt.s32.f32 %v1291
    %v1356 = vcvt.s32.f32 %v1292
    %v1357 = vcvt.s32.f32 %v1293
    %v1358 = vcvt.s32.f32 %v1294
    %v1359 = vcvt.s32.f32 %v1295
    %v1360 = vcvt.s32.f32 %v1296
    %v1361 = vcvt.s32.f32 %v1297
    %v1362 = vcvt.s32.f32 %v1298
    %v1363 = vcvt.s32.f32 %v1299
    %v1364 = vcvt.s32.f32 %v1300
    %v1365 = vcvt.s32.f32 %v1301
    %v1366 = vcvt.s32.f32 %v1302
    %v1367 = vcvt.s32.f32 %v1303
    %v1368 = vcvt.s32.f32 %v1304
    %v1369 = vcvt.s32.f32 %v1305
    %v1370 = vcvt.s32.f32 %v1306
    %v1371 = vcvt.s32.f32 %v1307
    %v1372 = vcvt.s32.f32 %v1308
    %v1373 = vcvt.s32.f32 %v1309
    %v1374 = vcvt.s32.f32 %v1310
    %v1375 = vcvt.s32.f32 %v1311
    %v1376 = vcvt.s32.f32 %v1312
    %v1377 = vcvt.s32.f32 %v1313
    %v1378 = vcvt.s32.f32 %v1314
    %v1379 = vcvt.s32.f32 %v1315
    %v1380 = vcvt.s32.f32 %v1316
    %v1381 = vcvt.s32.f32 %v1317
    %v1382 = vcvt.s32.f32 %v1318
    %v1383 = vcvt.s32.f32 %v1319
    %v1384 = vcvt.s32.f32 %v1320
    %v1385 = vcvt.s32.f32 %v1321
    %v1386 = vcvt.s32.f32 %v1322
    %v1387 = vcvt.s32.f32 %v1323
    %v1388 = vcvt.s32.f32 %v1324
    %v1389 = vcvt.s32.f32 %v1325
    %v1390 = vcvt.s32.f32 %v1326
    %v1391 = vcvt.s32.f32 %v1327
    %v1392 = vcvt.s32.f32 %v1328
    %v1393 = vcvt.s32.f32 %v1329
    %v1394 = vcvt.s32.f32 %v1330
    %v1395 = vcvt.s32.f32 %v1331
    %v1396 = vcvt.s32.f32 %v1332
    %v1397 = vcvt.s32.f32 %v1333
    %v1398 = vcvt.s32.f32 %v1334
    %v1399 = vcvt.s32.f32 %v1335
    %v1400 = vcvt.s32.f32 %v1336
    %v1401 = vcvt.s32.f32 %v1337
    %v1402 = vcvt.s32.f32 %v1338
    %v1403 = vcvt.s32.f32 %v1339
    %v1404 = vcvt.s32.f32 %v1340
    %v1405 = vcvt.s32.f32 %v1341
    %v1406 = vcvt.s32.f32 %v1342
    %v1407 = vcvt.s32.f32 %v1343
    %v1408 = vcvt.s32.f32 %v1344
    %v1409 = vcvt.s32.f32 %v1345
    %v1410 = vcvt.s32.f32 %v1346
    %v1411 = vcvt.s32.f32 %v1347
    %v1412 = vcvt.s32.f32 %v1348
    %v1413 = vpack.c.bf16 %v1350, %v1349
    %v1414 = vpack.c.bf16 %v1352, %v1351
    %v1415 = vpack.c.bf16 %v1354, %v1353
    %v1416 = vpack.c.bf16 %v1356, %v1355
    %v1417 = vpack.c.bf16 %v1358, %v1357
    %v1418 = vpack.c.bf16 %v1360, %v1359
    %v1419 = vpack.c.bf16 %v1362, %v1361
    %v1420 = vpack.c.bf16 %v1364, %v1363
    %v1421 = vpack.c.bf16 %v1366, %v1365
    %v1422 = vpack.c.bf16 %v1368, %v1367
    %v1423 = vpack.c.bf16 %v1370, %v1369
    %v1424 = vpack.c.bf16 %v1372, %v1371
    %v1425 = vpack.c.bf16 %v1374, %v1373
    %v1426 = vpack.c.bf16 %v1376, %v1375
    %v1427 = vpack.c.bf16 %v1378, %v1377
    %v1428 = vpack.c.bf16 %v1380, %v1379
    %v1429 = vpack.c.bf16 %v1382, %v1381
    %v1430 = vpack.c.bf16 %v1384, %v1383
    %v1431 = vpack.c.bf16 %v1386, %v1385
    %v1432 = vpack.c.bf16 %v1388, %v1387
    %v1433 = vpack.c.bf16 %v1390, %v1389
    %v1434 = vpack.c.bf16 %v1392, %v1391
    %v1435 = vpack.c.bf16 %v1394, %v1393
    %v1436 = vpack.c.bf16 %v1396, %v1395
    %v1437 = vpack.c.bf16 %v1398, %v1397
    %v1438 = vpack.c.bf16 %v1400, %v1399
    %v1439 = vpack.c.bf16 %v1402, %v1401
    %v1440 = vpack.c.bf16 %v1404, %v1403
    %v1441 = vpack.c.bf16 %v1406, %v1405
    %v1442 = vpack.c.bf16 %v1408, %v1407
    %v1443 = vpack.c.bf16 %v1410, %v1409
    %v1444 = vpack.c.bf16 %v1412, %v1411
    %v1445 = vpack.c.bf16 %v1265, %v1261
    %v1446 = vpack.c.bf16 %v1266, %v1262
    %v1447 = vpack.c.bf16 %v1267, %v1263
    %v1448 = vpack.c.bf16 %v1268, %v1264
    %1449 = vmatpush.bf16.msra.mxu0 %v1420
    %1450 = vmatpush.bf16.msra.mxu0 %v1419
    %1451 = vmatpush.bf16.msra.mxu0 %v1418
    %1452 = vmatpush.bf16.msra.mxu0 %v1417
    %1453 = vmatpush.bf16.msra.mxu0 %v1416
    %1454 = vmatpush.bf16.msra.mxu0 %v1415
    %1455 = vmatpush.bf16.msra.mxu0 %v1414
    %1456 = vmatpush.bf16.msra.mxu0 %v1413
    %1457 = vmatmul.bf16.gmra.mxu0 %v1445
    %v1458 = vpop.f32.mrf.mxu0
    %v1459 = vadd.f32 0.0, %v1458
    %v1460 = vpop.f32.mrf.mxu0
    %v1461 = vadd.f32 0.0, %v1460
    %1462 = vdwg.mxu0
    %1463 = vmatpush.bf16.msra.mxu0 %v1428
    %1464 = vmatpush.bf16.msra.mxu0 %v1427
    %1465 = vmatpush.bf16.msra.mxu0 %v1426
    %1466 = vmatpush.bf16.msra.mxu0 %v1425
    %1467 = vmatpush.bf16.msra.mxu0 %v1424
    %1468 = vmatpush.bf16.msra.mxu0 %v1423
    %1469 = vmatpush.bf16.msra.mxu0 %v1422
    %1470 = vmatpush.bf16.msra.mxu0 %v1421
    %1471 = vmatmul.bf16.gmra.mxu0 %v1446
    %v1472 = vpop.f32.mrf.mxu0
    %v1473 = vadd.f32 %v1459, %v1472
    %v1474 = vpop.f32.mrf.mxu0
    %v1475 = vadd.f32 %v1461, %v1474
    %1476 = vdwg.mxu0
    %1477 = vmatpush.bf16.msra.mxu0 %v1436
    %1478 = vmatpush.bf16.msra.mxu0 %v1435
    %1479 = vmatpush.bf16.msra.mxu0 %v1434
    %1480 = vmatpush.bf16.msra.mxu0 %v1433
    %1481 = vmatpush.bf16.msra.mxu0 %v1432
    %1482 = vmatpush.bf16.msra.mxu0 %v1431
    %1483 = vmatpush.bf16.msra.mxu0 %v1430
    %1484 = vmatpush.bf16.msra.mxu0 %v1429
    %1485 = vmatmul.bf16.gmra.mxu0 %v1447
    %v1486 = vpop.f32.mrf.mxu0
    %v1487 = vadd.f32 %v1473, %v1486
    %v1488 = vpop.f32.mrf.mxu0
    %v1489 = vadd.f32 %v1475, %v1488
    %1490 = vdwg.mxu0
    %1491 = vmatpush.bf16.msra.mxu0 %v1444
    %1492 = vmatpush.bf16.msra.mxu0 %v1443
    %1493 = vmatpush.bf16.msra.mxu0 %v1442
    %1494 = vmatpush.bf16.msra.mxu0 %v1441
    %1495 = vmatpush.bf16.msra.mxu0 %v1440
    %1496 = vmatpush.bf16.msra.mxu0 %v1439
    %1497 = vmatpush.bf16.msra.mxu0 %v1438
    %1498 = vmatpush.bf16.msra.mxu0 %v1437
    %1499 = vmatmul.bf16.gmra.mxu0 %v1448
    %v1500 = vpop.f32.mrf.mxu0
    %v1501 = vadd.f32 %v1487, %v1500
    %v1502 = vpop.f32.mrf.mxu0
    %v1503 = vadd.f32 %v1489, %v1502
    %1504 = vdwg.mxu0
    %v1505 = vld [vmem:[%s8] sm:$0x1]
    %v1507 = vperm.slane %v1505, 0
    %v1509 = vmul.f32 %v1501, %v1507
    %v1510 = vmul.f32 %v1503, %v1507
    %v1511 = vld [vmem:[%s9] sm:$0x1]
    %v1513 = vperm.slane %v1511, 0
    %v1515 = vadd.f32 %v1509, %v1513
    %v1516 = vadd.f32 %v1510, %v1513
    %1517 = vst [vmem:[#allocation14] sm:$0xff] %v1515
    %1518 = vst [vmem:[#allocation14 + $0x8] sm:$0xff] %v1516
    // Predicated region
    $region70: #{tpu_custom_call.1} parent=1 // pred_check
      _
    $region71: #{tpu_custom_call.1} parent=1 // pred_check_branch
      %1520 = sbr.rel (0) target = $region73
    $region72: #{tpu_custom_call.1} parent=1 // pred_region
      %1522 = vsyncadd [#allocation4], 0
      %s1523 = sshll.u32 [#allocation14], 4
      %s1524 = int_to_ptr.vmem [resolvable:$true] %s1523
      %s1525 = sshll.u32 %s10, 4
      %s1526 = int_to_ptr.hbm [resolvable:$true] %s1525
      %1531 = dma.vmem_to_hbm [thread:$0]  %s1524, 256, %s1526, [#allocation4], 128, 128, 8
    $region73: #{tpu_custom_call.1} parent=1 // pred_fallthru
      _
    // Predicated region
    $region74: #{tpu_custom_call.1} parent=1 // pred_check
      _
    $region75: #{tpu_custom_call.1} parent=1 // pred_check_branch
      %1533 = sbr.rel (0) target = $region77
    $region76: #{tpu_custom_call.1} parent=1 // pred_region
      %1535 = dma.done [#allocation4], 256
    $region77: #{tpu_custom_call.1} parent=1 // pred_fallthru
      _
    %1536 = vsyncpa [#allocation3], 1
    %1537 = vsyncpa [#allocation6], 1
    %1538 = vsyncpa [#allocation9], 1
    %1539 = vsyncpa [#allocation12], 1
    %1540 = vsyncpa [#allocation4], 1

</llo_original>
